<compile_context>
chip_gen: v7x
topology: tpu7x:2x2x1
jax: 0.10.0
libtpu: 0.0.40
codegen_flags: <defaults>
</compile_context>

<pallas_src>
import functools

import jax
import jax.numpy as jnp
import numpy as np
from jax import lax
from jax.experimental import pallas as pl
from jax.experimental.pallas import tpu as pltpu

KERNEL_CONDENSE_RATIO = 0.7
_CHUNK = 8  # sublane-sized chunk for the in-kernel M loop


# ----------------------------- Pallas kernel -------------------------------

def _kprop_fused_kernel(frag_ref, ctr_ref, kern_ref, w_ref, b_ref,
                        feats_ref, cnt_ref, wts_acc, cnt_acc, *, radius, sigma):
    # frag_ref : (MT, 3)        fragment-point tile (varies only with the M grid axis)
    # ctr_ref  : (1, 3, NT)     centers for this (batch, lane tile), each repeated NA times
    # kern_ref : (3, KS, NT)    rotated kernel offsets, tiled NC times along lanes
    # w_ref    : (COUT, KS)     BasicSO3Conv weight
    # b_ref    : (COUT, 1)      BasicSO3Conv bias
    # feats_ref: (1, COUT, NT)  output tile (lane index = c*NA + a), written at last M step
    # cnt_ref  : (1, 1, NT)     per-center neighbor count (repeated NA times on lanes)
    # wts_acc  : (KS, NT) VMEM  un-normalized anchor-weight accumulator (persists over M steps)
    # cnt_acc  : (1, NT)  VMEM  neighbor-count accumulator (persists over M steps)
    MT = frag_ref.shape[0]
    _, KS, NT = kern_ref.shape
    COUT = w_ref.shape[0]

    m_step = pl.program_id(2)

    @pl.when(m_step == 0)
    def _():
        wts_acc[...] = jnp.zeros_like(wts_acc)
        cnt_acc[...] = jnp.zeros_like(cnt_acc)

    ctr = ctr_ref[0]            # (3, NT)
    kern = kern_ref[...]        # (3, KS, NT)

    r2 = radius * radius
    neg_inv_sigma = -1.0 / sigma
    n_chunks = MT // _CHUNK

    # Hoist loop-invariant lane rows out of the chunk loop (JAX does not CSE these inside it).
    c_rows = [ctr[j:j + 1, :] for j in range(3)]                       # 3 x (1, NT)
    k_rows = [[kern[j, k:k + 1, :] for j in range(3)] for k in range(KS)]

    def chunk_body(c, carry):
        cnt_p, wts_p = carry
        off = pl.multiple_of(c * _CHUNK, _CHUNK)
        fc = frag_ref[pl.ds(off, _CHUNK), :]                           # (CHUNK, 3)
        d0 = fc[:, 0:1] - c_rows[0]                                    # (CHUNK, NT)
        d1 = fc[:, 1:2] - c_rows[1]
        d2 = fc[:, 2:3] - c_rows[2]
        # Radius gate from directly-differenced squared distance (no cancellation).
        d2c = d0 * d0 + d1 * d1 + d2 * d2
        in_r = (d2c < r2).astype(jnp.float32)
        cnt_p = cnt_p + in_r
        # TODO(synk): optional dot-product expansion (fold exp(-|k_pt|^2/sigma) into W) would
        # shave ~3 VPU ops per element at the cost of one extra exp; kept the exact direct form.
        new_wts = []
        for k in range(KS):                                            # KS is small & static
            t0 = d0 - k_rows[k][0]
            t1 = d1 - k_rows[k][1]
            t2 = d2 - k_rows[k][2]
            dd = t0 * t0 + t1 * t1 + t2 * t2
            new_wts.append(wts_p[k] + jnp.exp(dd * neg_inv_sigma) * in_r)
        return cnt_p, tuple(new_wts)

    init = (jnp.zeros((_CHUNK, NT), jnp.float32),
            tuple(jnp.zeros((_CHUNK, NT), jnp.float32) for _ in range(KS)))
    cnt_p, wts_p = lax.fori_loop(0, n_chunks, chunk_body, init,
                                 unroll=(n_chunks <= 8))

    # Cross-sublane reductions once per grid step (XLU), then accumulate into VMEM scratch.
    cnt_acc[...] += jnp.sum(cnt_p, axis=0, keepdims=True)              # (1, NT)
    wts_rows = jnp.concatenate(
        [jnp.sum(wts_p[k], axis=0, keepdims=True) for k in range(KS)], axis=0)  # (KS, NT)
    wts_acc[...] += wts_rows

    @pl.when(m_step == pl.num_programs(2) - 1)
    def _():
        cnt = cnt_acc[...]                                             # (1, NT)
        # Exact normalization, applied once per output tile (deferred out of the M/k loops).
        wts = wts_acc[...] * (1.0 / (cnt + 1.0))                       # (KS, NT)
        # Tiny BasicSO3Conv: KS broadcast-FMAs (broadcasts done once, at finalize only).
        w = w_ref[...]                                                 # (COUT, KS)
        acc = jnp.zeros((COUT, NT), jnp.float32)
        for k in range(KS):
            acc = acc + w[:, k:k + 1] * wts[k:k + 1, :]
        feats_ref[0] = acc + b_ref[...]
        cnt_ref[0] = cnt


# ------------------------------- Wrapper ----------------------------------

def _pick_tile(total, target, quantum):
    if total <= target:
        return total
    t = (target // quantum) * quantum
    while total % t:
        t -= quantum
    return t


def kernel_propagation_forward(frag, clouds, rotated_kernels, W, bias, radius, sigma,
                               *, m_tile=256, ncna_tile=512):
    """Returns (centers, feats, cnt): feats (B, COUT, NC, NA), cnt (B, NC)."""
    B, _, NC = clouds.shape
    KS, NA, _ = rotated_kernels.shape
    M = frag.shape[0]
    COUT = W.shape[0]
    NCNA = NC * NA

    # TODO(synk): furthest-point subsampling (_subsample) is skipped; we assume
    # clouds.shape[2] == n_center, i.e. the `centers = clouds` branch.

    assert M % _CHUNK == 0, "fragment point count must be a multiple of 8"
    assert NCNA % 128 == 0, "NC*NA must be a multiple of 128 for lane-dense layout"
    MT = _pick_tile(M, m_tile, _CHUNK)          # M tile  (reduction grid axis, innermost)
    NT = _pick_tile(NCNA, ncna_tile, 128)       # lane tile (parallel grid axis)

    # Lane-dense layout plumbing (tiny arrays, done once outside the kernel):
    #   ctr_rep[b, j, c*NA + a]  = clouds[b, j, c]
    #   kern_lane[j, k, c*NA+a]  = rotated_kernels[k, a, j]
    ctr_rep = jnp.repeat(clouds, NA, axis=2)                                      # (B, 3, NCNA)
    kern_lane = jnp.tile(jnp.transpose(rotated_kernels, (2, 0, 1)), (1, 1, NC))   # (3, KS, NCNA)

    grid = (B, NCNA // NT, M // MT)   # (parallel, parallel, arbitrary-reduction last)

    feats_flat, cnt_rep = pl.pallas_call(
        functools.partial(_kprop_fused_kernel, radius=float(radius), sigma=float(sigma)),
        out_shape=(jax.ShapeDtypeStruct((B, COUT, NCNA), jnp.float32),
                   jax.ShapeDtypeStruct((B, 1, NCNA), jnp.float32)),
        grid=grid,
        in_specs=[pl.BlockSpec((MT, 3), lambda b, n, m: (m, 0)),          # frag: varies with M only
                  pl.BlockSpec((1, 3, NT), lambda b, n, m: (b, 0, n)),    # centers: resident over M
                  pl.BlockSpec((3, KS, NT), lambda b, n, m: (0, 0, n)),   # kernels: resident over M
                  pl.BlockSpec((COUT, KS), lambda b, n, m: (0, 0)),
                  pl.BlockSpec((COUT, 1), lambda b, n, m: (0, 0))],
        out_specs=(pl.BlockSpec((1, COUT, NT), lambda b, n, m: (b, 0, n)),
                   pl.BlockSpec((1, 1, NT), lambda b, n, m: (b, 0, n))),
        scratch_shapes=[pltpu.VMEM((KS, NT), jnp.float32),   # un-normalized wts accumulator
                        pltpu.VMEM((1, NT), jnp.float32)],   # neighbor-count accumulator
        compiler_params=pltpu.CompilerParams(
            dimension_semantics=("parallel", "parallel", "arbitrary"),
            vmem_limit_bytes=32 * 1024 * 1024),
    )(frag, ctr_rep, kern_lane, W, bias)

    feats = feats_flat.reshape(B, COUT, NC, NA)
    cnt = cnt_rep[:, 0, :].reshape(B, NC, NA)[:, :, 0]                            # per-center count
    return clouds, feats, cnt


# ----------------------------- JAX reference -------------------------------

def reference_forward(frag, clouds, rotated_kernels, W, bias, radius, sigma):
    centers = jnp.transpose(clouds, (0, 2, 1))                                    # (B, NC, 3)
    diffc = frag[None, :, None, :] - centers[:, None, :, :]                       # (B, M, NC, 3)
    d2c = jnp.sum(diffc * diffc, axis=-1)
    in_r = (d2c < radius * radius).astype(jnp.float32)                            # (B, M, NC)
    cnt = jnp.sum(in_r, axis=1)                                                   # (B, NC)

    pos = centers[:, None, None, :, :] + rotated_kernels[None, :, :, None, :]     # (B, KS, NA, NC, 3)
    diff = frag[None, :, None, None, None, :] - pos[:, None]                      # (B, M, KS, NA, NC, 3)
    d2 = jnp.sum(diff * diff, axis=-1)                                            # (B, M, KS, NA, NC)
    w = jnp.exp(-d2 / sigma) * in_r[:, :, None, None, :]
    wts = jnp.sum(w, axis=1)                                                      # (B, KS, NA, NC)
    wts = wts / (cnt[:, None, None, :] + 1.0)
    wts = jnp.transpose(wts, (0, 1, 3, 2))                                        # (B, KS, NC, NA)

    B, KS, NC, NA = wts.shape
    x = wts.reshape(B, KS, NC * NA)
    y = jnp.einsum('ok,bkn->bon', W, x) + bias[None]
    return y.reshape(B, W.shape[0], NC, NA), cnt


# --------------------------------- main ------------------------------------

if __name__ == "__main__":
    M, B, NC = 64, 2, 16          # frag points, batch, n_center
    KS, NA = 4, 8                 # kernel points, anchors (kanchor kept small); NC*NA = 128 lanes
    DIM_IN, DIM_OUT = 1, 8        # forward() uses wts.unsqueeze(1) -> dim_in == 1
    radius, sigma = 0.5, 0.08

    key = jax.random.PRNGKey(0)
    kf, kc, kk, ka, kw = jax.random.split(key, 5)

    frag = jax.random.uniform(kf, (M, 3), jnp.float32)
    clouds = jax.random.uniform(kc, (B, 3, NC), jnp.float32)

    # TODO(synk): vgtk loads sphere kernel points from a .ply and anchors from a file;
    # here we synthesize deterministic equivalents (points in a condensed ball, random rotations).
    kern_pts = (jax.random.uniform(kk, (KS, 3), jnp.float32) - 0.5) * (2.0 * KERNEL_CONDENSE_RATIO * radius)
    A = jax.random.normal(ka, (NA, 3, 3), jnp.float32)
    Q, _ = jnp.linalg.qr(A)
    anchors = Q * jnp.sign(jnp.linalg.det(Q))[:, None, None]                      # det = +1 rotations
    rotated_kernels = jnp.einsum('aij,kj->kai', anchors, kern_pts)                # (KS, NA, 3)

    # BasicSO3Conv params: xavier_normal_(gain=sqrt(2)) on (DIM_OUT, DIM_IN, KS), bias = 0.001
    fan_in, fan_out = DIM_IN * KS, DIM_OUT * KS
    std = float(np.sqrt(2.0) * np.sqrt(2.0 / (fan_in + fan_out)))
    W = std * jax.random.normal(kw, (DIM_OUT, DIM_IN * KS), jnp.float32)
    bias = jnp.full((DIM_OUT, 1), 0.001, jnp.float32)

    centers_out, feats, cnt = kernel_propagation_forward(
        frag, clouds, rotated_kernels, W, bias, radius, sigma)
    feats = jax.block_until_ready(feats)

    feats_ref, cnt_ref = reference_forward(
        frag, clouds, rotated_kernels, W, bias, radius, sigma)

    assert feats.shape == (B, DIM_OUT, NC, NA)
    np.testing.assert_allclose(np.asarray(cnt), np.asarray(cnt_ref), rtol=1e-3, atol=1e-3)
    np.testing.assert_allclose(np.asarray(feats), np.asarray(feats_ref), rtol=1e-3, atol=1e-3)

    print("KERNEL_OK")
</pallas_src>

<mosaic_0001>
module attributes {stable_mosaic.version = 11 : i64} {
  func.func @_kprop_fused_kernel(%arg0: i32, %arg1: i32, %arg2: i32, %arg3: memref<64x3xf32, #tpu.memory_space<vmem>>, %arg4: memref<1x3x128xf32, #tpu.memory_space<vmem>>, %arg5: memref<3x4x128xf32, #tpu.memory_space<vmem>>, %arg6: memref<8x4xf32, #tpu.memory_space<vmem>>, %arg7: memref<8x1xf32, #tpu.memory_space<vmem>>, %arg8: memref<1x8x128xf32, #tpu.memory_space<vmem>>, %arg9: memref<1x1x128xf32, #tpu.memory_space<vmem>>, %arg10: memref<4x128xf32, #tpu.memory_space<vmem>>, %arg11: memref<1x128xf32, #tpu.memory_space<vmem>>) attributes {dimension_semantics = [#tpu.dimension_semantics<parallel>, #tpu.dimension_semantics<parallel>, #tpu.dimension_semantics<arbitrary>], iteration_bounds = array<i64: 2, 1, 1>, scalar_prefetch = 0 : i64, scratch_operands = 2 : i64, tpu.core_type = #tpu.core_type<tc>, window_params = [{transform_indices = @transform_0, window_bounds = array<i64: 64, 3>}, {transform_indices = @transform_1, window_bounds = array<i64: 1, 3, 128>}, {transform_indices = @transform_2, window_bounds = array<i64: 3, 4, 128>}, {pipeline_mode = #tpu.pipeline_mode<synchronous>, transform_indices = @transform_3, window_bounds = array<i64: 8, 4>}, {pipeline_mode = #tpu.pipeline_mode<synchronous>, transform_indices = @transform_4, window_bounds = array<i64: 8, 1>}, {transform_indices = @transform_5, window_bounds = array<i64: 1, 8, 128>}, {transform_indices = @transform_6, window_bounds = array<i64: 1, 1, 128>}]} {
    %c0_i32 = arith.constant 0 : i32
    %0 = arith.cmpi eq, %arg2, %c0_i32 : i32
    %1 = arith.extui %0 : i1 to i32
    %c0_i32_0 = arith.constant 0 : i32
    %2 = arith.cmpi ne, %1, %c0_i32_0 : i32
    scf.if %2 {
      %cst_82 = arith.constant 0.000000e+00 : f32
      %778 = vector.broadcast %cst_82 : f32 to vector<4x128xf32>
      %c0_83 = arith.constant 0 : index
      %c0_84 = arith.constant 0 : index
      %779 = vector.load %arg10[%c0_83, %c0_84] : memref<4x128xf32, #tpu.memory_space<vmem>>, vector<4x128xf32>
      tpu.vector_store %arg10[%c0_83, %c0_84], %778 {strides = array<i32>} : memref<4x128xf32, #tpu.memory_space<vmem>>, vector<4x128xf32>,
      %cst_85 = arith.constant 0.000000e+00 : f32
      %780 = vector.broadcast %cst_85 : f32 to vector<1x128xf32>
      %c0_86 = arith.constant 0 : index
      %c0_87 = arith.constant 0 : index
      %781 = vector.load %arg11[%c0_86, %c0_87] : memref<1x128xf32, #tpu.memory_space<vmem>>, vector<1x128xf32>
      tpu.vector_store %arg11[%c0_86, %c0_87], %780 {strides = array<i32>} : memref<1x128xf32, #tpu.memory_space<vmem>>, vector<1x128xf32>,
    } else {
    }
    %c0 = arith.constant 0 : index
    %c0_1 = arith.constant 0 : index
    %c0_2 = arith.constant 0 : index
    %3 = vector.load %arg4[%c0, %c0_1, %c0_2] : memref<1x3x128xf32, #tpu.memory_space<vmem>>, vector<1x3x128xf32>
    %4 = vector.shape_cast %3 : vector<1x3x128xf32> to vector<3x128xf32>
    %c0_3 = arith.constant 0 : index
    %c0_4 = arith.constant 0 : index
    %c0_5 = arith.constant 0 : index
    %5 = vector.load %arg5[%c0_3, %c0_4, %c0_5] : memref<3x4x128xf32, #tpu.memory_space<vmem>>, vector<3x4x128xf32>
    %6 = vector.extract_strided_slice %4 {offsets = [0, 0], sizes = [1, 128], strides = [1, 1]} : vector<3x128xf32> to vector<1x128xf32>
    %7 = vector.extract_strided_slice %4 {offsets = [1, 0], sizes = [1, 128], strides = [1, 1]} : vector<3x128xf32> to vector<1x128xf32>
    %8 = vector.extract_strided_slice %4 {offsets = [2, 0], sizes = [1, 128], strides = [1, 1]} : vector<3x128xf32> to vector<1x128xf32>
    %9 = vector.extract_strided_slice %5 {offsets = [0, 0, 0], sizes = [1, 1, 128], strides = [1, 1, 1]} : vector<3x4x128xf32> to vector<1x1x128xf32>
    %10 = vector.shape_cast %9 : vector<1x1x128xf32> to vector<1x128xf32>
    %11 = vector.extract_strided_slice %5 {offsets = [1, 0, 0], sizes = [1, 1, 128], strides = [1, 1, 1]} : vector<3x4x128xf32> to vector<1x1x128xf32>
    %12 = vector.shape_cast %11 : vector<1x1x128xf32> to vector<1x128xf32>
    %13 = vector.extract_strided_slice %5 {offsets = [2, 0, 0], sizes = [1, 1, 128], strides = [1, 1, 1]} : vector<3x4x128xf32> to vector<1x1x128xf32>
    %14 = vector.shape_cast %13 : vector<1x1x128xf32> to vector<1x128xf32>
    %15 = vector.extract_strided_slice %5 {offsets = [0, 1, 0], sizes = [1, 1, 128], strides = [1, 1, 1]} : vector<3x4x128xf32> to vector<1x1x128xf32>
    %16 = vector.shape_cast %15 : vector<1x1x128xf32> to vector<1x128xf32>
    %17 = vector.extract_strided_slice %5 {offsets = [1, 1, 0], sizes = [1, 1, 128], strides = [1, 1, 1]} : vector<3x4x128xf32> to vector<1x1x128xf32>
    %18 = vector.shape_cast %17 : vector<1x1x128xf32> to vector<1x128xf32>
    %19 = vector.extract_strided_slice %5 {offsets = [2, 1, 0], sizes = [1, 1, 128], strides = [1, 1, 1]} : vector<3x4x128xf32> to vector<1x1x128xf32>
    %20 = vector.shape_cast %19 : vector<1x1x128xf32> to vector<1x128xf32>
    %21 = vector.extract_strided_slice %5 {offsets = [0, 2, 0], sizes = [1, 1, 128], strides = [1, 1, 1]} : vector<3x4x128xf32> to vector<1x1x128xf32>
    %22 = vector.shape_cast %21 : vector<1x1x128xf32> to vector<1x128xf32>
    %23 = vector.extract_strided_slice %5 {offsets = [1, 2, 0], sizes = [1, 1, 128], strides = [1, 1, 1]} : vector<3x4x128xf32> to vector<1x1x128xf32>
    %24 = vector.shape_cast %23 : vector<1x1x128xf32> to vector<1x128xf32>
    %25 = vector.extract_strided_slice %5 {offsets = [2, 2, 0], sizes = [1, 1, 128], strides = [1, 1, 1]} : vector<3x4x128xf32> to vector<1x1x128xf32>
    %26 = vector.shape_cast %25 : vector<1x1x128xf32> to vector<1x128xf32>
    %27 = vector.extract_strided_slice %5 {offsets = [0, 3, 0], sizes = [1, 1, 128], strides = [1, 1, 1]} : vector<3x4x128xf32> to vector<1x1x128xf32>
    %28 = vector.shape_cast %27 : vector<1x1x128xf32> to vector<1x128xf32>
    %29 = vector.extract_strided_slice %5 {offsets = [1, 3, 0], sizes = [1, 1, 128], strides = [1, 1, 1]} : vector<3x4x128xf32> to vector<1x1x128xf32>
    %30 = vector.shape_cast %29 : vector<1x1x128xf32> to vector<1x128xf32>
    %31 = vector.extract_strided_slice %5 {offsets = [2, 3, 0], sizes = [1, 1, 128], strides = [1, 1, 1]} : vector<3x4x128xf32> to vector<1x1x128xf32>
    %32 = vector.shape_cast %31 : vector<1x1x128xf32> to vector<1x128xf32>
    %cst = arith.constant 0.000000e+00 : f32
    %33 = vector.broadcast %cst : f32 to vector<8x128xf32>
    %cst_6 = arith.constant 0.000000e+00 : f32
    %34 = vector.broadcast %cst_6 : f32 to vector<8x128xf32>
    %cst_7 = arith.constant 0.000000e+00 : f32
    %35 = vector.broadcast %cst_7 : f32 to vector<8x128xf32>
    %cst_8 = arith.constant 0.000000e+00 : f32
    %36 = vector.broadcast %cst_8 : f32 to vector<8x128xf32>
    %cst_9 = arith.constant 0.000000e+00 : f32
    %37 = vector.broadcast %cst_9 : f32 to vector<8x128xf32>
    %c0_i32_10 = arith.constant 0 : i32
    %c8_i32 = arith.constant 8 : i32
    %38 = arith.muli %c0_i32_10, %c8_i32 : i32
    %39 = tpu.assume_multiple %38, 8 : i32
    %40 = arith.index_cast %39 : i32 to index
    %c0_11 = arith.constant 0 : index
    %41 = vector.load %arg3[%40, %c0_11] : memref<64x3xf32, #tpu.memory_space<vmem>>, vector<8x3xf32>
    %42 = vector.extract_strided_slice %41 {offsets = [0, 0], sizes = [8, 1], strides = [1, 1]} : vector<8x3xf32> to vector<8x1xf32>
    %43 = vector.broadcast %42 : vector<8x1xf32> to vector<8x128xf32>
    %44 = vector.broadcast %6 : vector<1x128xf32> to vector<8x128xf32>
    %45 = arith.subf %43, %44 : vector<8x128xf32>
    %46 = vector.extract_strided_slice %41 {offsets = [0, 1], sizes = [8, 1], strides = [1, 1]} : vector<8x3xf32> to vector<8x1xf32>
    %47 = vector.broadcast %46 : vector<8x1xf32> to vector<8x128xf32>
    %48 = vector.broadcast %7 : vector<1x128xf32> to vector<8x128xf32>
    %49 = arith.subf %47, %48 : vector<8x128xf32>
    %50 = vector.extract_strided_slice %41 {offsets = [0, 2], sizes = [8, 1], strides = [1, 1]} : vector<8x3xf32> to vector<8x1xf32>
    %51 = vector.broadcast %50 : vector<8x1xf32> to vector<8x128xf32>
    %52 = vector.broadcast %8 : vector<1x128xf32> to vector<8x128xf32>
    %53 = arith.subf %51, %52 : vector<8x128xf32>
    %54 = arith.mulf %45, %45 : vector<8x128xf32>
    %55 = arith.mulf %49, %49 : vector<8x128xf32>
    %56 = arith.addf %54, %55 : vector<8x128xf32>
    %57 = arith.mulf %53, %53 : vector<8x128xf32>
    %58 = arith.addf %56, %57 : vector<8x128xf32>
    %cst_12 = arith.constant 2.500000e-01 : f32
    %59 = vector.broadcast %cst_12 : f32 to vector<8x128xf32>
    %60 = arith.cmpf olt, %58, %59 : vector<8x128xf32>
    %61 = arith.extui %60 : vector<8x128xi1> to vector<8x128xi32>
    %62 = arith.sitofp %61 : vector<8x128xi32> to vector<8x128xf32>
    %63 = arith.addf %33, %62 : vector<8x128xf32>
    %64 = vector.broadcast %10 : vector<1x128xf32> to vector<8x128xf32>
    %65 = arith.subf %45, %64 : vector<8x128xf32>
    %66 = vector.broadcast %12 : vector<1x128xf32> to vector<8x128xf32>
    %67 = arith.subf %49, %66 : vector<8x128xf32>
    %68 = vector.broadcast %14 : vector<1x128xf32> to vector<8x128xf32>
    %69 = arith.subf %53, %68 : vector<8x128xf32>
    %70 = arith.mulf %65, %65 : vector<8x128xf32>
    %71 = arith.mulf %67, %67 : vector<8x128xf32>
    %72 = arith.addf %70, %71 : vector<8x128xf32>
    %73 = arith.mulf %69, %69 : vector<8x128xf32>
    %74 = arith.addf %72, %73 : vector<8x128xf32>
    %cst_13 = arith.constant -1.250000e+01 : f32
    %75 = vector.broadcast %cst_13 : f32 to vector<8x128xf32>
    %76 = arith.mulf %74, %75 : vector<8x128xf32>
    %77 = math.exp %76 : vector<8x128xf32>
    %78 = arith.mulf %77, %62 : vector<8x128xf32>
    %79 = arith.addf %34, %78 : vector<8x128xf32>
    %80 = vector.broadcast %16 : vector<1x128xf32> to vector<8x128xf32>
    %81 = arith.subf %45, %80 : vector<8x128xf32>
    %82 = vector.broadcast %18 : vector<1x128xf32> to vector<8x128xf32>
    %83 = arith.subf %49, %82 : vector<8x128xf32>
    %84 = vector.broadcast %20 : vector<1x128xf32> to vector<8x128xf32>
    %85 = arith.subf %53, %84 : vector<8x128xf32>
    %86 = arith.mulf %81, %81 : vector<8x128xf32>
    %87 = arith.mulf %83, %83 : vector<8x128xf32>
    %88 = arith.addf %86, %87 : vector<8x128xf32>
    %89 = arith.mulf %85, %85 : vector<8x128xf32>
    %90 = arith.addf %88, %89 : vector<8x128xf32>
    %cst_14 = arith.constant -1.250000e+01 : f32
    %91 = vector.broadcast %cst_14 : f32 to vector<8x128xf32>
    %92 = arith.mulf %90, %91 : vector<8x128xf32>
    %93 = math.exp %92 : vector<8x128xf32>
    %94 = arith.mulf %93, %62 : vector<8x128xf32>
    %95 = arith.addf %35, %94 : vector<8x128xf32>
    %96 = vector.broadcast %22 : vector<1x128xf32> to vector<8x128xf32>
    %97 = arith.subf %45, %96 : vector<8x128xf32>
    %98 = vector.broadcast %24 : vector<1x128xf32> to vector<8x128xf32>
    %99 = arith.subf %49, %98 : vector<8x128xf32>
    %100 = vector.broadcast %26 : vector<1x128xf32> to vector<8x128xf32>
    %101 = arith.subf %53, %100 : vector<8x128xf32>
    %102 = arith.mulf %97, %97 : vector<8x128xf32>
    %103 = arith.mulf %99, %99 : vector<8x128xf32>
    %104 = arith.addf %102, %103 : vector<8x128xf32>
    %105 = arith.mulf %101, %101 : vector<8x128xf32>
    %106 = arith.addf %104, %105 : vector<8x128xf32>
    %cst_15 = arith.constant -1.250000e+01 : f32
    %107 = vector.broadcast %cst_15 : f32 to vector<8x128xf32>
    %108 = arith.mulf %106, %107 : vector<8x128xf32>
    %109 = math.exp %108 : vector<8x128xf32>
    %110 = arith.mulf %109, %62 : vector<8x128xf32>
    %111 = arith.addf %36, %110 : vector<8x128xf32>
    %112 = vector.broadcast %28 : vector<1x128xf32> to vector<8x128xf32>
    %113 = arith.subf %45, %112 : vector<8x128xf32>
    %114 = vector.broadcast %30 : vector<1x128xf32> to vector<8x128xf32>
    %115 = arith.subf %49, %114 : vector<8x128xf32>
    %116 = vector.broadcast %32 : vector<1x128xf32> to vector<8x128xf32>
    %117 = arith.subf %53, %116 : vector<8x128xf32>
    %118 = arith.mulf %113, %113 : vector<8x128xf32>
    %119 = arith.mulf %115, %115 : vector<8x128xf32>
    %120 = arith.addf %118, %119 : vector<8x128xf32>
    %121 = arith.mulf %117, %117 : vector<8x128xf32>
    %122 = arith.addf %120, %121 : vector<8x128xf32>
    %cst_16 = arith.constant -1.250000e+01 : f32
    %123 = vector.broadcast %cst_16 : f32 to vector<8x128xf32>
    %124 = arith.mulf %122, %123 : vector<8x128xf32>
    %125 = math.exp %124 : vector<8x128xf32>
    %126 = arith.mulf %125, %62 : vector<8x128xf32>
    %127 = arith.addf %37, %126 : vector<8x128xf32>
    %c1_i32 = arith.constant 1 : i32
    %c8_i32_17 = arith.constant 8 : i32
    %128 = arith.muli %c1_i32, %c8_i32_17 : i32
    %129 = tpu.assume_multiple %128, 8 : i32
    %130 = arith.index_cast %129 : i32 to index
    %c0_18 = arith.constant 0 : index
    %131 = vector.load %arg3[%130, %c0_18] : memref<64x3xf32, #tpu.memory_space<vmem>>, vector<8x3xf32>
    %132 = vector.extract_strided_slice %131 {offsets = [0, 0], sizes = [8, 1], strides = [1, 1]} : vector<8x3xf32> to vector<8x1xf32>
    %133 = vector.broadcast %132 : vector<8x1xf32> to vector<8x128xf32>
    %134 = vector.broadcast %6 : vector<1x128xf32> to vector<8x128xf32>
    %135 = arith.subf %133, %134 : vector<8x128xf32>
    %136 = vector.extract_strided_slice %131 {offsets = [0, 1], sizes = [8, 1], strides = [1, 1]} : vector<8x3xf32> to vector<8x1xf32>
    %137 = vector.broadcast %136 : vector<8x1xf32> to vector<8x128xf32>
    %138 = vector.broadcast %7 : vector<1x128xf32> to vector<8x128xf32>
    %139 = arith.subf %137, %138 : vector<8x128xf32>
    %140 = vector.extract_strided_slice %131 {offsets = [0, 2], sizes = [8, 1], strides = [1, 1]} : vector<8x3xf32> to vector<8x1xf32>
    %141 = vector.broadcast %140 : vector<8x1xf32> to vector<8x128xf32>
    %142 = vector.broadcast %8 : vector<1x128xf32> to vector<8x128xf32>
    %143 = arith.subf %141, %142 : vector<8x128xf32>
    %144 = arith.mulf %135, %135 : vector<8x128xf32>
    %145 = arith.mulf %139, %139 : vector<8x128xf32>
    %146 = arith.addf %144, %145 : vector<8x128xf32>
    %147 = arith.mulf %143, %143 : vector<8x128xf32>
    %148 = arith.addf %146, %147 : vector<8x128xf32>
    %cst_19 = arith.constant 2.500000e-01 : f32
    %149 = vector.broadcast %cst_19 : f32 to vector<8x128xf32>
    %150 = arith.cmpf olt, %148, %149 : vector<8x128xf32>
    %151 = arith.extui %150 : vector<8x128xi1> to vector<8x128xi32>
    %152 = arith.sitofp %151 : vector<8x128xi32> to vector<8x128xf32>
    %153 = arith.addf %63, %152 : vector<8x128xf32>
    %154 = vector.broadcast %10 : vector<1x128xf32> to vector<8x128xf32>
    %155 = arith.subf %135, %154 : vector<8x128xf32>
    %156 = vector.broadcast %12 : vector<1x128xf32> to vector<8x128xf32>
    %157 = arith.subf %139, %156 : vector<8x128xf32>
    %158 = vector.broadcast %14 : vector<1x128xf32> to vector<8x128xf32>
    %159 = arith.subf %143, %158 : vector<8x128xf32>
    %160 = arith.mulf %155, %155 : vector<8x128xf32>
    %161 = arith.mulf %157, %157 : vector<8x128xf32>
    %162 = arith.addf %160, %161 : vector<8x128xf32>
    %163 = arith.mulf %159, %159 : vector<8x128xf32>
    %164 = arith.addf %162, %163 : vector<8x128xf32>
    %cst_20 = arith.constant -1.250000e+01 : f32
    %165 = vector.broadcast %cst_20 : f32 to vector<8x128xf32>
    %166 = arith.mulf %164, %165 : vector<8x128xf32>
    %167 = math.exp %166 : vector<8x128xf32>
    %168 = arith.mulf %167, %152 : vector<8x128xf32>
    %169 = arith.addf %79, %168 : vector<8x128xf32>
    %170 = vector.broadcast %16 : vector<1x128xf32> to vector<8x128xf32>
    %171 = arith.subf %135, %170 : vector<8x128xf32>
    %172 = vector.broadcast %18 : vector<1x128xf32> to vector<8x128xf32>
    %173 = arith.subf %139, %172 : vector<8x128xf32>
    %174 = vector.broadcast %20 : vector<1x128xf32> to vector<8x128xf32>
    %175 = arith.subf %143, %174 : vector<8x128xf32>
    %176 = arith.mulf %171, %171 : vector<8x128xf32>
    %177 = arith.mulf %173, %173 : vector<8x128xf32>
    %178 = arith.addf %176, %177 : vector<8x128xf32>
    %179 = arith.mulf %175, %175 : vector<8x128xf32>
    %180 = arith.addf %178, %179 : vector<8x128xf32>
    %cst_21 = arith.constant -1.250000e+01 : f32
    %181 = vector.broadcast %cst_21 : f32 to vector<8x128xf32>
    %182 = arith.mulf %180, %181 : vector<8x128xf32>
    %183 = math.exp %182 : vector<8x128xf32>
    %184 = arith.mulf %183, %152 : vector<8x128xf32>
    %185 = arith.addf %95, %184 : vector<8x128xf32>
    %186 = vector.broadcast %22 : vector<1x128xf32> to vector<8x128xf32>
    %187 = arith.subf %135, %186 : vector<8x128xf32>
    %188 = vector.broadcast %24 : vector<1x128xf32> to vector<8x128xf32>
    %189 = arith.subf %139, %188 : vector<8x128xf32>
    %190 = vector.broadcast %26 : vector<1x128xf32> to vector<8x128xf32>
    %191 = arith.subf %143, %190 : vector<8x128xf32>
    %192 = arith.mulf %187, %187 : vector<8x128xf32>
    %193 = arith.mulf %189, %189 : vector<8x128xf32>
    %194 = arith.addf %192, %193 : vector<8x128xf32>
    %195 = arith.mulf %191, %191 : vector<8x128xf32>
    %196 = arith.addf %194, %195 : vector<8x128xf32>
    %cst_22 = arith.constant -1.250000e+01 : f32
    %197 = vector.broadcast %cst_22 : f32 to vector<8x128xf32>
    %198 = arith.mulf %196, %197 : vector<8x128xf32>
    %199 = math.exp %198 : vector<8x128xf32>
    %200 = arith.mulf %199, %152 : vector<8x128xf32>
    %201 = arith.addf %111, %200 : vector<8x128xf32>
    %202 = vector.broadcast %28 : vector<1x128xf32> to vector<8x128xf32>
    %203 = arith.subf %135, %202 : vector<8x128xf32>
    %204 = vector.broadcast %30 : vector<1x128xf32> to vector<8x128xf32>
    %205 = arith.subf %139, %204 : vector<8x128xf32>
    %206 = vector.broadcast %32 : vector<1x128xf32> to vector<8x128xf32>
    %207 = arith.subf %143, %206 : vector<8x128xf32>
    %208 = arith.mulf %203, %203 : vector<8x128xf32>
    %209 = arith.mulf %205, %205 : vector<8x128xf32>
    %210 = arith.addf %208, %209 : vector<8x128xf32>
    %211 = arith.mulf %207, %207 : vector<8x128xf32>
    %212 = arith.addf %210, %211 : vector<8x128xf32>
    %cst_23 = arith.constant -1.250000e+01 : f32
    %213 = vector.broadcast %cst_23 : f32 to vector<8x128xf32>
    %214 = arith.mulf %212, %213 : vector<8x128xf32>
    %215 = math.exp %214 : vector<8x128xf32>
    %216 = arith.mulf %215, %152 : vector<8x128xf32>
    %217 = arith.addf %127, %216 : vector<8x128xf32>
    %c2_i32 = arith.constant 2 : i32
    %c8_i32_24 = arith.constant 8 : i32
    %218 = arith.muli %c2_i32, %c8_i32_24 : i32
    %219 = tpu.assume_multiple %218, 8 : i32
    %220 = arith.index_cast %219 : i32 to index
    %c0_25 = arith.constant 0 : index
    %221 = vector.load %arg3[%220, %c0_25] : memref<64x3xf32, #tpu.memory_space<vmem>>, vector<8x3xf32>
    %222 = vector.extract_strided_slice %221 {offsets = [0, 0], sizes = [8, 1], strides = [1, 1]} : vector<8x3xf32> to vector<8x1xf32>
    %223 = vector.broadcast %222 : vector<8x1xf32> to vector<8x128xf32>
    %224 = vector.broadcast %6 : vector<1x128xf32> to vector<8x128xf32>
    %225 = arith.subf %223, %224 : vector<8x128xf32>
    %226 = vector.extract_strided_slice %221 {offsets = [0, 1], sizes = [8, 1], strides = [1, 1]} : vector<8x3xf32> to vector<8x1xf32>
    %227 = vector.broadcast %226 : vector<8x1xf32> to vector<8x128xf32>
    %228 = vector.broadcast %7 : vector<1x128xf32> to vector<8x128xf32>
    %229 = arith.subf %227, %228 : vector<8x128xf32>
    %230 = vector.extract_strided_slice %221 {offsets = [0, 2], sizes = [8, 1], strides = [1, 1]} : vector<8x3xf32> to vector<8x1xf32>
    %231 = vector.broadcast %230 : vector<8x1xf32> to vector<8x128xf32>
    %232 = vector.broadcast %8 : vector<1x128xf32> to vector<8x128xf32>
    %233 = arith.subf %231, %232 : vector<8x128xf32>
    %234 = arith.mulf %225, %225 : vector<8x128xf32>
    %235 = arith.mulf %229, %229 : vector<8x128xf32>
    %236 = arith.addf %234, %235 : vector<8x128xf32>
    %237 = arith.mulf %233, %233 : vector<8x128xf32>
    %238 = arith.addf %236, %237 : vector<8x128xf32>
    %cst_26 = arith.constant 2.500000e-01 : f32
    %239 = vector.broadcast %cst_26 : f32 to vector<8x128xf32>
    %240 = arith.cmpf olt, %238, %239 : vector<8x128xf32>
    %241 = arith.extui %240 : vector<8x128xi1> to vector<8x128xi32>
    %242 = arith.sitofp %241 : vector<8x128xi32> to vector<8x128xf32>
    %243 = arith.addf %153, %242 : vector<8x128xf32>
    %244 = vector.broadcast %10 : vector<1x128xf32> to vector<8x128xf32>
    %245 = arith.subf %225, %244 : vector<8x128xf32>
    %246 = vector.broadcast %12 : vector<1x128xf32> to vector<8x128xf32>
    %247 = arith.subf %229, %246 : vector<8x128xf32>
    %248 = vector.broadcast %14 : vector<1x128xf32> to vector<8x128xf32>
    %249 = arith.subf %233, %248 : vector<8x128xf32>
    %250 = arith.mulf %245, %245 : vector<8x128xf32>
    %251 = arith.mulf %247, %247 : vector<8x128xf32>
    %252 = arith.addf %250, %251 : vector<8x128xf32>
    %253 = arith.mulf %249, %249 : vector<8x128xf32>
    %254 = arith.addf %252, %253 : vector<8x128xf32>
    %cst_27 = arith.constant -1.250000e+01 : f32
    %255 = vector.broadcast %cst_27 : f32 to vector<8x128xf32>
    %256 = arith.mulf %254, %255 : vector<8x128xf32>
    %257 = math.exp %256 : vector<8x128xf32>
    %258 = arith.mulf %257, %242 : vector<8x128xf32>
    %259 = arith.addf %169, %258 : vector<8x128xf32>
    %260 = vector.broadcast %16 : vector<1x128xf32> to vector<8x128xf32>
    %261 = arith.subf %225, %260 : vector<8x128xf32>
    %262 = vector.broadcast %18 : vector<1x128xf32> to vector<8x128xf32>
    %263 = arith.subf %229, %262 : vector<8x128xf32>
    %264 = vector.broadcast %20 : vector<1x128xf32> to vector<8x128xf32>
    %265 = arith.subf %233, %264 : vector<8x128xf32>
    %266 = arith.mulf %261, %261 : vector<8x128xf32>
    %267 = arith.mulf %263, %263 : vector<8x128xf32>
    %268 = arith.addf %266, %267 : vector<8x128xf32>
    %269 = arith.mulf %265, %265 : vector<8x128xf32>
    %270 = arith.addf %268, %269 : vector<8x128xf32>
    %cst_28 = arith.constant -1.250000e+01 : f32
    %271 = vector.broadcast %cst_28 : f32 to vector<8x128xf32>
    %272 = arith.mulf %270, %271 : vector<8x128xf32>
    %273 = math.exp %272 : vector<8x128xf32>
    %274 = arith.mulf %273, %242 : vector<8x128xf32>
    %275 = arith.addf %185, %274 : vector<8x128xf32>
    %276 = vector.broadcast %22 : vector<1x128xf32> to vector<8x128xf32>
    %277 = arith.subf %225, %276 : vector<8x128xf32>
    %278 = vector.broadcast %24 : vector<1x128xf32> to vector<8x128xf32>
    %279 = arith.subf %229, %278 : vector<8x128xf32>
    %280 = vector.broadcast %26 : vector<1x128xf32> to vector<8x128xf32>
    %281 = arith.subf %233, %280 : vector<8x128xf32>
    %282 = arith.mulf %277, %277 : vector<8x128xf32>
    %283 = arith.mulf %279, %279 : vector<8x128xf32>
    %284 = arith.addf %282, %283 : vector<8x128xf32>
    %285 = arith.mulf %281, %281 : vector<8x128xf32>
    %286 = arith.addf %284, %285 : vector<8x128xf32>
    %cst_29 = arith.constant -1.250000e+01 : f32
    %287 = vector.broadcast %cst_29 : f32 to vector<8x128xf32>
    %288 = arith.mulf %286, %287 : vector<8x128xf32>
    %289 = math.exp %288 : vector<8x128xf32>
    %290 = arith.mulf %289, %242 : vector<8x128xf32>
    %291 = arith.addf %201, %290 : vector<8x128xf32>
    %292 = vector.broadcast %28 : vector<1x128xf32> to vector<8x128xf32>
    %293 = arith.subf %225, %292 : vector<8x128xf32>
    %294 = vector.broadcast %30 : vector<1x128xf32> to vector<8x128xf32>
    %295 = arith.subf %229, %294 : vector<8x128xf32>
    %296 = vector.broadcast %32 : vector<1x128xf32> to vector<8x128xf32>
    %297 = arith.subf %233, %296 : vector<8x128xf32>
    %298 = arith.mulf %293, %293 : vector<8x128xf32>
    %299 = arith.mulf %295, %295 : vector<8x128xf32>
    %300 = arith.addf %298, %299 : vector<8x128xf32>
    %301 = arith.mulf %297, %297 : vector<8x128xf32>
    %302 = arith.addf %300, %301 : vector<8x128xf32>
    %cst_30 = arith.constant -1.250000e+01 : f32
    %303 = vector.broadcast %cst_30 : f32 to vector<8x128xf32>
    %304 = arith.mulf %302, %303 : vector<8x128xf32>
    %305 = math.exp %304 : vector<8x128xf32>
    %306 = arith.mulf %305, %242 : vector<8x128xf32>
    %307 = arith.addf %217, %306 : vector<8x128xf32>
    %c3_i32 = arith.constant 3 : i32
    %c8_i32_31 = arith.constant 8 : i32
    %308 = arith.muli %c3_i32, %c8_i32_31 : i32
    %309 = tpu.assume_multiple %308, 8 : i32
    %310 = arith.index_cast %309 : i32 to index
    %c0_32 = arith.constant 0 : index
    %311 = vector.load %arg3[%310, %c0_32] : memref<64x3xf32, #tpu.memory_space<vmem>>, vector<8x3xf32>
    %312 = vector.extract_strided_slice %311 {offsets = [0, 0], sizes = [8, 1], strides = [1, 1]} : vector<8x3xf32> to vector<8x1xf32>
    %313 = vector.broadcast %312 : vector<8x1xf32> to vector<8x128xf32>
    %314 = vector.broadcast %6 : vector<1x128xf32> to vector<8x128xf32>
    %315 = arith.subf %313, %314 : vector<8x128xf32>
    %316 = vector.extract_strided_slice %311 {offsets = [0, 1], sizes = [8, 1], strides = [1, 1]} : vector<8x3xf32> to vector<8x1xf32>
    %317 = vector.broadcast %316 : vector<8x1xf32> to vector<8x128xf32>
    %318 = vector.broadcast %7 : vector<1x128xf32> to vector<8x128xf32>
    %319 = arith.subf %317, %318 : vector<8x128xf32>
    %320 = vector.extract_strided_slice %311 {offsets = [0, 2], sizes = [8, 1], strides = [1, 1]} : vector<8x3xf32> to vector<8x1xf32>
    %321 = vector.broadcast %320 : vector<8x1xf32> to vector<8x128xf32>
    %322 = vector.broadcast %8 : vector<1x128xf32> to vector<8x128xf32>
    %323 = arith.subf %321, %322 : vector<8x128xf32>
    %324 = arith.mulf %315, %315 : vector<8x128xf32>
    %325 = arith.mulf %319, %319 : vector<8x128xf32>
    %326 = arith.addf %324, %325 : vector<8x128xf32>
    %327 = arith.mulf %323, %323 : vector<8x128xf32>
    %328 = arith.addf %326, %327 : vector<8x128xf32>
    %cst_33 = arith.constant 2.500000e-01 : f32
    %329 = vector.broadcast %cst_33 : f32 to vector<8x128xf32>
    %330 = arith.cmpf olt, %328, %329 : vector<8x128xf32>
    %331 = arith.extui %330 : vector<8x128xi1> to vector<8x128xi32>
    %332 = arith.sitofp %331 : vector<8x128xi32> to vector<8x128xf32>
    %333 = arith.addf %243, %332 : vector<8x128xf32>
    %334 = vector.broadcast %10 : vector<1x128xf32> to vector<8x128xf32>
    %335 = arith.subf %315, %334 : vector<8x128xf32>
    %336 = vector.broadcast %12 : vector<1x128xf32> to vector<8x128xf32>
    %337 = arith.subf %319, %336 : vector<8x128xf32>
    %338 = vector.broadcast %14 : vector<1x128xf32> to vector<8x128xf32>
    %339 = arith.subf %323, %338 : vector<8x128xf32>
    %340 = arith.mulf %335, %335 : vector<8x128xf32>
    %341 = arith.mulf %337, %337 : vector<8x128xf32>
    %342 = arith.addf %340, %341 : vector<8x128xf32>
    %343 = arith.mulf %339, %339 : vector<8x128xf32>
    %344 = arith.addf %342, %343 : vector<8x128xf32>
    %cst_34 = arith.constant -1.250000e+01 : f32
    %345 = vector.broadcast %cst_34 : f32 to vector<8x128xf32>
    %346 = arith.mulf %344, %345 : vector<8x128xf32>
    %347 = math.exp %346 : vector<8x128xf32>
    %348 = arith.mulf %347, %332 : vector<8x128xf32>
    %349 = arith.addf %259, %348 : vector<8x128xf32>
    %350 = vector.broadcast %16 : vector<1x128xf32> to vector<8x128xf32>
    %351 = arith.subf %315, %350 : vector<8x128xf32>
    %352 = vector.broadcast %18 : vector<1x128xf32> to vector<8x128xf32>
    %353 = arith.subf %319, %352 : vector<8x128xf32>
    %354 = vector.broadcast %20 : vector<1x128xf32> to vector<8x128xf32>
    %355 = arith.subf %323, %354 : vector<8x128xf32>
    %356 = arith.mulf %351, %351 : vector<8x128xf32>
    %357 = arith.mulf %353, %353 : vector<8x128xf32>
    %358 = arith.addf %356, %357 : vector<8x128xf32>
    %359 = arith.mulf %355, %355 : vector<8x128xf32>
    %360 = arith.addf %358, %359 : vector<8x128xf32>
    %cst_35 = arith.constant -1.250000e+01 : f32
    %361 = vector.broadcast %cst_35 : f32 to vector<8x128xf32>
    %362 = arith.mulf %360, %361 : vector<8x128xf32>
    %363 = math.exp %362 : vector<8x128xf32>
    %364 = arith.mulf %363, %332 : vector<8x128xf32>
    %365 = arith.addf %275, %364 : vector<8x128xf32>
    %366 = vector.broadcast %22 : vector<1x128xf32> to vector<8x128xf32>
    %367 = arith.subf %315, %366 : vector<8x128xf32>
    %368 = vector.broadcast %24 : vector<1x128xf32> to vector<8x128xf32>
    %369 = arith.subf %319, %368 : vector<8x128xf32>
    %370 = vector.broadcast %26 : vector<1x128xf32> to vector<8x128xf32>
    %371 = arith.subf %323, %370 : vector<8x128xf32>
    %372 = arith.mulf %367, %367 : vector<8x128xf32>
    %373 = arith.mulf %369, %369 : vector<8x128xf32>
    %374 = arith.addf %372, %373 : vector<8x128xf32>
    %375 = arith.mulf %371, %371 : vector<8x128xf32>
    %376 = arith.addf %374, %375 : vector<8x128xf32>
    %cst_36 = arith.constant -1.250000e+01 : f32
    %377 = vector.broadcast %cst_36 : f32 to vector<8x128xf32>
    %378 = arith.mulf %376, %377 : vector<8x128xf32>
    %379 = math.exp %378 : vector<8x128xf32>
    %380 = arith.mulf %379, %332 : vector<8x128xf32>
    %381 = arith.addf %291, %380 : vector<8x128xf32>
    %382 = vector.broadcast %28 : vector<1x128xf32> to vector<8x128xf32>
    %383 = arith.subf %315, %382 : vector<8x128xf32>
    %384 = vector.broadcast %30 : vector<1x128xf32> to vector<8x128xf32>
    %385 = arith.subf %319, %384 : vector<8x128xf32>
    %386 = vector.broadcast %32 : vector<1x128xf32> to vector<8x128xf32>
    %387 = arith.subf %323, %386 : vector<8x128xf32>
    %388 = arith.mulf %383, %383 : vector<8x128xf32>
    %389 = arith.mulf %385, %385 : vector<8x128xf32>
    %390 = arith.addf %388, %389 : vector<8x128xf32>
    %391 = arith.mulf %387, %387 : vector<8x128xf32>
    %392 = arith.addf %390, %391 : vector<8x128xf32>
    %cst_37 = arith.constant -1.250000e+01 : f32
    %393 = vector.broadcast %cst_37 : f32 to vector<8x128xf32>
    %394 = arith.mulf %392, %393 : vector<8x128xf32>
    %395 = math.exp %394 : vector<8x128xf32>
    %396 = arith.mulf %395, %332 : vector<8x128xf32>
    %397 = arith.addf %307, %396 : vector<8x128xf32>
    %c4_i32 = arith.constant 4 : i32
    %c8_i32_38 = arith.constant 8 : i32
    %398 = arith.muli %c4_i32, %c8_i32_38 : i32
    %399 = tpu.assume_multiple %398, 8 : i32
    %400 = arith.index_cast %399 : i32 to index
    %c0_39 = arith.constant 0 : index
    %401 = vector.load %arg3[%400, %c0_39] : memref<64x3xf32, #tpu.memory_space<vmem>>, vector<8x3xf32>
    %402 = vector.extract_strided_slice %401 {offsets = [0, 0], sizes = [8, 1], strides = [1, 1]} : vector<8x3xf32> to vector<8x1xf32>
    %403 = vector.broadcast %402 : vector<8x1xf32> to vector<8x128xf32>
    %404 = vector.broadcast %6 : vector<1x128xf32> to vector<8x128xf32>
    %405 = arith.subf %403, %404 : vector<8x128xf32>
    %406 = vector.extract_strided_slice %401 {offsets = [0, 1], sizes = [8, 1], strides = [1, 1]} : vector<8x3xf32> to vector<8x1xf32>
    %407 = vector.broadcast %406 : vector<8x1xf32> to vector<8x128xf32>
    %408 = vector.broadcast %7 : vector<1x128xf32> to vector<8x128xf32>
    %409 = arith.subf %407, %408 : vector<8x128xf32>
    %410 = vector.extract_strided_slice %401 {offsets = [0, 2], sizes = [8, 1], strides = [1, 1]} : vector<8x3xf32> to vector<8x1xf32>
    %411 = vector.broadcast %410 : vector<8x1xf32> to vector<8x128xf32>
    %412 = vector.broadcast %8 : vector<1x128xf32> to vector<8x128xf32>
    %413 = arith.subf %411, %412 : vector<8x128xf32>
    %414 = arith.mulf %405, %405 : vector<8x128xf32>
    %415 = arith.mulf %409, %409 : vector<8x128xf32>
    %416 = arith.addf %414, %415 : vector<8x128xf32>
    %417 = arith.mulf %413, %413 : vector<8x128xf32>
    %418 = arith.addf %416, %417 : vector<8x128xf32>
    %cst_40 = arith.constant 2.500000e-01 : f32
    %419 = vector.broadcast %cst_40 : f32 to vector<8x128xf32>
    %420 = arith.cmpf olt, %418, %419 : vector<8x128xf32>
    %421 = arith.extui %420 : vector<8x128xi1> to vector<8x128xi32>
    %422 = arith.sitofp %421 : vector<8x128xi32> to vector<8x128xf32>
    %423 = arith.addf %333, %422 : vector<8x128xf32>
    %424 = vector.broadcast %10 : vector<1x128xf32> to vector<8x128xf32>
    %425 = arith.subf %405, %424 : vector<8x128xf32>
    %426 = vector.broadcast %12 : vector<1x128xf32> to vector<8x128xf32>
    %427 = arith.subf %409, %426 : vector<8x128xf32>
    %428 = vector.broadcast %14 : vector<1x128xf32> to vector<8x128xf32>
    %429 = arith.subf %413, %428 : vector<8x128xf32>
    %430 = arith.mulf %425, %425 : vector<8x128xf32>
    %431 = arith.mulf %427, %427 : vector<8x128xf32>
    %432 = arith.addf %430, %431 : vector<8x128xf32>
    %433 = arith.mulf %429, %429 : vector<8x128xf32>
    %434 = arith.addf %432, %433 : vector<8x128xf32>
    %cst_41 = arith.constant -1.250000e+01 : f32
    %435 = vector.broadcast %cst_41 : f32 to vector<8x128xf32>
    %436 = arith.mulf %434, %435 : vector<8x128xf32>
    %437 = math.exp %436 : vector<8x128xf32>
    %438 = arith.mulf %437, %422 : vector<8x128xf32>
    %439 = arith.addf %349, %438 : vector<8x128xf32>
    %440 = vector.broadcast %16 : vector<1x128xf32> to vector<8x128xf32>
    %441 = arith.subf %405, %440 : vector<8x128xf32>
    %442 = vector.broadcast %18 : vector<1x128xf32> to vector<8x128xf32>
    %443 = arith.subf %409, %442 : vector<8x128xf32>
    %444 = vector.broadcast %20 : vector<1x128xf32> to vector<8x128xf32>
    %445 = arith.subf %413, %444 : vector<8x128xf32>
    %446 = arith.mulf %441, %441 : vector<8x128xf32>
    %447 = arith.mulf %443, %443 : vector<8x128xf32>
    %448 = arith.addf %446, %447 : vector<8x128xf32>
    %449 = arith.mulf %445, %445 : vector<8x128xf32>
    %450 = arith.addf %448, %449 : vector<8x128xf32>
    %cst_42 = arith.constant -1.250000e+01 : f32
    %451 = vector.broadcast %cst_42 : f32 to vector<8x128xf32>
    %452 = arith.mulf %450, %451 : vector<8x128xf32>
    %453 = math.exp %452 : vector<8x128xf32>
    %454 = arith.mulf %453, %422 : vector<8x128xf32>
    %455 = arith.addf %365, %454 : vector<8x128xf32>
    %456 = vector.broadcast %22 : vector<1x128xf32> to vector<8x128xf32>
    %457 = arith.subf %405, %456 : vector<8x128xf32>
    %458 = vector.broadcast %24 : vector<1x128xf32> to vector<8x128xf32>
    %459 = arith.subf %409, %458 : vector<8x128xf32>
    %460 = vector.broadcast %26 : vector<1x128xf32> to vector<8x128xf32>
    %461 = arith.subf %413, %460 : vector<8x128xf32>
    %462 = arith.mulf %457, %457 : vector<8x128xf32>
    %463 = arith.mulf %459, %459 : vector<8x128xf32>
    %464 = arith.addf %462, %463 : vector<8x128xf32>
    %465 = arith.mulf %461, %461 : vector<8x128xf32>
    %466 = arith.addf %464, %465 : vector<8x128xf32>
    %cst_43 = arith.constant -1.250000e+01 : f32
    %467 = vector.broadcast %cst_43 : f32 to vector<8x128xf32>
    %468 = arith.mulf %466, %467 : vector<8x128xf32>
    %469 = math.exp %468 : vector<8x128xf32>
    %470 = arith.mulf %469, %422 : vector<8x128xf32>
    %471 = arith.addf %381, %470 : vector<8x128xf32>
    %472 = vector.broadcast %28 : vector<1x128xf32> to vector<8x128xf32>
    %473 = arith.subf %405, %472 : vector<8x128xf32>
    %474 = vector.broadcast %30 : vector<1x128xf32> to vector<8x128xf32>
    %475 = arith.subf %409, %474 : vector<8x128xf32>
    %476 = vector.broadcast %32 : vector<1x128xf32> to vector<8x128xf32>
    %477 = arith.subf %413, %476 : vector<8x128xf32>
    %478 = arith.mulf %473, %473 : vector<8x128xf32>
    %479 = arith.mulf %475, %475 : vector<8x128xf32>
    %480 = arith.addf %478, %479 : vector<8x128xf32>
    %481 = arith.mulf %477, %477 : vector<8x128xf32>
    %482 = arith.addf %480, %481 : vector<8x128xf32>
    %cst_44 = arith.constant -1.250000e+01 : f32
    %483 = vector.broadcast %cst_44 : f32 to vector<8x128xf32>
    %484 = arith.mulf %482, %483 : vector<8x128xf32>
    %485 = math.exp %484 : vector<8x128xf32>
    %486 = arith.mulf %485, %422 : vector<8x128xf32>
    %487 = arith.addf %397, %486 : vector<8x128xf32>
    %c5_i32 = arith.constant 5 : i32
    %c8_i32_45 = arith.constant 8 : i32
    %488 = arith.muli %c5_i32, %c8_i32_45 : i32
    %489 = tpu.assume_multiple %488, 8 : i32
    %490 = arith.index_cast %489 : i32 to index
    %c0_46 = arith.constant 0 : index
    %491 = vector.load %arg3[%490, %c0_46] : memref<64x3xf32, #tpu.memory_space<vmem>>, vector<8x3xf32>
    %492 = vector.extract_strided_slice %491 {offsets = [0, 0], sizes = [8, 1], strides = [1, 1]} : vector<8x3xf32> to vector<8x1xf32>
    %493 = vector.broadcast %492 : vector<8x1xf32> to vector<8x128xf32>
    %494 = vector.broadcast %6 : vector<1x128xf32> to vector<8x128xf32>
    %495 = arith.subf %493, %494 : vector<8x128xf32>
    %496 = vector.extract_strided_slice %491 {offsets = [0, 1], sizes = [8, 1], strides = [1, 1]} : vector<8x3xf32> to vector<8x1xf32>
    %497 = vector.broadcast %496 : vector<8x1xf32> to vector<8x128xf32>
    %498 = vector.broadcast %7 : vector<1x128xf32> to vector<8x128xf32>
    %499 = arith.subf %497, %498 : vector<8x128xf32>
    %500 = vector.extract_strided_slice %491 {offsets = [0, 2], sizes = [8, 1], strides = [1, 1]} : vector<8x3xf32> to vector<8x1xf32>
    %501 = vector.broadcast %500 : vector<8x1xf32> to vector<8x128xf32>
    %502 = vector.broadcast %8 : vector<1x128xf32> to vector<8x128xf32>
    %503 = arith.subf %501, %502 : vector<8x128xf32>
    %504 = arith.mulf %495, %495 : vector<8x128xf32>
    %505 = arith.mulf %499, %499 : vector<8x128xf32>
    %506 = arith.addf %504, %505 : vector<8x128xf32>
    %507 = arith.mulf %503, %503 : vector<8x128xf32>
    %508 = arith.addf %506, %507 : vector<8x128xf32>
    %cst_47 = arith.constant 2.500000e-01 : f32
    %509 = vector.broadcast %cst_47 : f32 to vector<8x128xf32>
    %510 = arith.cmpf olt, %508, %509 : vector<8x128xf32>
    %511 = arith.extui %510 : vector<8x128xi1> to vector<8x128xi32>
    %512 = arith.sitofp %511 : vector<8x128xi32> to vector<8x128xf32>
    %513 = arith.addf %423, %512 : vector<8x128xf32>
    %514 = vector.broadcast %10 : vector<1x128xf32> to vector<8x128xf32>
    %515 = arith.subf %495, %514 : vector<8x128xf32>
    %516 = vector.broadcast %12 : vector<1x128xf32> to vector<8x128xf32>
    %517 = arith.subf %499, %516 : vector<8x128xf32>
    %518 = vector.broadcast %14 : vector<1x128xf32> to vector<8x128xf32>
    %519 = arith.subf %503, %518 : vector<8x128xf32>
    %520 = arith.mulf %515, %515 : vector<8x128xf32>
    %521 = arith.mulf %517, %517 : vector<8x128xf32>
    %522 = arith.addf %520, %521 : vector<8x128xf32>
    %523 = arith.mulf %519, %519 : vector<8x128xf32>
    %524 = arith.addf %522, %523 : vector<8x128xf32>
    %cst_48 = arith.constant -1.250000e+01 : f32
    %525 = vector.broadcast %cst_48 : f32 to vector<8x128xf32>
    %526 = arith.mulf %524, %525 : vector<8x128xf32>
    %527 = math.exp %526 : vector<8x128xf32>
    %528 = arith.mulf %527, %512 : vector<8x128xf32>
    %529 = arith.addf %439, %528 : vector<8x128xf32>
    %530 = vector.broadcast %16 : vector<1x128xf32> to vector<8x128xf32>
    %531 = arith.subf %495, %530 : vector<8x128xf32>
    %532 = vector.broadcast %18 : vector<1x128xf32> to vector<8x128xf32>
    %533 = arith.subf %499, %532 : vector<8x128xf32>
    %534 = vector.broadcast %20 : vector<1x128xf32> to vector<8x128xf32>
    %535 = arith.subf %503, %534 : vector<8x128xf32>
    %536 = arith.mulf %531, %531 : vector<8x128xf32>
    %537 = arith.mulf %533, %533 : vector<8x128xf32>
    %538 = arith.addf %536, %537 : vector<8x128xf32>
    %539 = arith.mulf %535, %535 : vector<8x128xf32>
    %540 = arith.addf %538, %539 : vector<8x128xf32>
    %cst_49 = arith.constant -1.250000e+01 : f32
    %541 = vector.broadcast %cst_49 : f32 to vector<8x128xf32>
    %542 = arith.mulf %540, %541 : vector<8x128xf32>
    %543 = math.exp %542 : vector<8x128xf32>
    %544 = arith.mulf %543, %512 : vector<8x128xf32>
    %545 = arith.addf %455, %544 : vector<8x128xf32>
    %546 = vector.broadcast %22 : vector<1x128xf32> to vector<8x128xf32>
    %547 = arith.subf %495, %546 : vector<8x128xf32>
    %548 = vector.broadcast %24 : vector<1x128xf32> to vector<8x128xf32>
    %549 = arith.subf %499, %548 : vector<8x128xf32>
    %550 = vector.broadcast %26 : vector<1x128xf32> to vector<8x128xf32>
    %551 = arith.subf %503, %550 : vector<8x128xf32>
    %552 = arith.mulf %547, %547 : vector<8x128xf32>
    %553 = arith.mulf %549, %549 : vector<8x128xf32>
    %554 = arith.addf %552, %553 : vector<8x128xf32>
    %555 = arith.mulf %551, %551 : vector<8x128xf32>
    %556 = arith.addf %554, %555 : vector<8x128xf32>
    %cst_50 = arith.constant -1.250000e+01 : f32
    %557 = vector.broadcast %cst_50 : f32 to vector<8x128xf32>
    %558 = arith.mulf %556, %557 : vector<8x128xf32>
    %559 = math.exp %558 : vector<8x128xf32>
    %560 = arith.mulf %559, %512 : vector<8x128xf32>
    %561 = arith.addf %471, %560 : vector<8x128xf32>
    %562 = vector.broadcast %28 : vector<1x128xf32> to vector<8x128xf32>
    %563 = arith.subf %495, %562 : vector<8x128xf32>
    %564 = vector.broadcast %30 : vector<1x128xf32> to vector<8x128xf32>
    %565 = arith.subf %499, %564 : vector<8x128xf32>
    %566 = vector.broadcast %32 : vector<1x128xf32> to vector<8x128xf32>
    %567 = arith.subf %503, %566 : vector<8x128xf32>
    %568 = arith.mulf %563, %563 : vector<8x128xf32>
    %569 = arith.mulf %565, %565 : vector<8x128xf32>
    %570 = arith.addf %568, %569 : vector<8x128xf32>
    %571 = arith.mulf %567, %567 : vector<8x128xf32>
    %572 = arith.addf %570, %571 : vector<8x128xf32>
    %cst_51 = arith.constant -1.250000e+01 : f32
    %573 = vector.broadcast %cst_51 : f32 to vector<8x128xf32>
    %574 = arith.mulf %572, %573 : vector<8x128xf32>
    %575 = math.exp %574 : vector<8x128xf32>
    %576 = arith.mulf %575, %512 : vector<8x128xf32>
    %577 = arith.addf %487, %576 : vector<8x128xf32>
    %c6_i32 = arith.constant 6 : i32
    %c8_i32_52 = arith.constant 8 : i32
    %578 = arith.muli %c6_i32, %c8_i32_52 : i32
    %579 = tpu.assume_multiple %578, 8 : i32
    %580 = arith.index_cast %579 : i32 to index
    %c0_53 = arith.constant 0 : index
    %581 = vector.load %arg3[%580, %c0_53] : memref<64x3xf32, #tpu.memory_space<vmem>>, vector<8x3xf32>
    %582 = vector.extract_strided_slice %581 {offsets = [0, 0], sizes = [8, 1], strides = [1, 1]} : vector<8x3xf32> to vector<8x1xf32>
    %583 = vector.broadcast %582 : vector<8x1xf32> to vector<8x128xf32>
    %584 = vector.broadcast %6 : vector<1x128xf32> to vector<8x128xf32>
    %585 = arith.subf %583, %584 : vector<8x128xf32>
    %586 = vector.extract_strided_slice %581 {offsets = [0, 1], sizes = [8, 1], strides = [1, 1]} : vector<8x3xf32> to vector<8x1xf32>
    %587 = vector.broadcast %586 : vector<8x1xf32> to vector<8x128xf32>
    %588 = vector.broadcast %7 : vector<1x128xf32> to vector<8x128xf32>
    %589 = arith.subf %587, %588 : vector<8x128xf32>
    %590 = vector.extract_strided_slice %581 {offsets = [0, 2], sizes = [8, 1], strides = [1, 1]} : vector<8x3xf32> to vector<8x1xf32>
    %591 = vector.broadcast %590 : vector<8x1xf32> to vector<8x128xf32>
    %592 = vector.broadcast %8 : vector<1x128xf32> to vector<8x128xf32>
    %593 = arith.subf %591, %592 : vector<8x128xf32>
    %594 = arith.mulf %585, %585 : vector<8x128xf32>
    %595 = arith.mulf %589, %589 : vector<8x128xf32>
    %596 = arith.addf %594, %595 : vector<8x128xf32>
    %597 = arith.mulf %593, %593 : vector<8x128xf32>
    %598 = arith.addf %596, %597 : vector<8x128xf32>
    %cst_54 = arith.constant 2.500000e-01 : f32
    %599 = vector.broadcast %cst_54 : f32 to vector<8x128xf32>
    %600 = arith.cmpf olt, %598, %599 : vector<8x128xf32>
    %601 = arith.extui %600 : vector<8x128xi1> to vector<8x128xi32>
    %602 = arith.sitofp %601 : vector<8x128xi32> to vector<8x128xf32>
    %603 = arith.addf %513, %602 : vector<8x128xf32>
    %604 = vector.broadcast %10 : vector<1x128xf32> to vector<8x128xf32>
    %605 = arith.subf %585, %604 : vector<8x128xf32>
    %606 = vector.broadcast %12 : vector<1x128xf32> to vector<8x128xf32>
    %607 = arith.subf %589, %606 : vector<8x128xf32>
    %608 = vector.broadcast %14 : vector<1x128xf32> to vector<8x128xf32>
    %609 = arith.subf %593, %608 : vector<8x128xf32>
    %610 = arith.mulf %605, %605 : vector<8x128xf32>
    %611 = arith.mulf %607, %607 : vector<8x128xf32>
    %612 = arith.addf %610, %611 : vector<8x128xf32>
    %613 = arith.mulf %609, %609 : vector<8x128xf32>
    %614 = arith.addf %612, %613 : vector<8x128xf32>
    %cst_55 = arith.constant -1.250000e+01 : f32
    %615 = vector.broadcast %cst_55 : f32 to vector<8x128xf32>
    %616 = arith.mulf %614, %615 : vector<8x128xf32>
    %617 = math.exp %616 : vector<8x128xf32>
    %618 = arith.mulf %617, %602 : vector<8x128xf32>
    %619 = arith.addf %529, %618 : vector<8x128xf32>
    %620 = vector.broadcast %16 : vector<1x128xf32> to vector<8x128xf32>
    %621 = arith.subf %585, %620 : vector<8x128xf32>
    %622 = vector.broadcast %18 : vector<1x128xf32> to vector<8x128xf32>
    %623 = arith.subf %589, %622 : vector<8x128xf32>
    %624 = vector.broadcast %20 : vector<1x128xf32> to vector<8x128xf32>
    %625 = arith.subf %593, %624 : vector<8x128xf32>
    %626 = arith.mulf %621, %621 : vector<8x128xf32>
    %627 = arith.mulf %623, %623 : vector<8x128xf32>
    %628 = arith.addf %626, %627 : vector<8x128xf32>
    %629 = arith.mulf %625, %625 : vector<8x128xf32>
    %630 = arith.addf %628, %629 : vector<8x128xf32>
    %cst_56 = arith.constant -1.250000e+01 : f32
    %631 = vector.broadcast %cst_56 : f32 to vector<8x128xf32>
    %632 = arith.mulf %630, %631 : vector<8x128xf32>
    %633 = math.exp %632 : vector<8x128xf32>
    %634 = arith.mulf %633, %602 : vector<8x128xf32>
    %635 = arith.addf %545, %634 : vector<8x128xf32>
    %636 = vector.broadcast %22 : vector<1x128xf32> to vector<8x128xf32>
    %637 = arith.subf %585, %636 : vector<8x128xf32>
    %638 = vector.broadcast %24 : vector<1x128xf32> to vector<8x128xf32>
    %639 = arith.subf %589, %638 : vector<8x128xf32>
    %640 = vector.broadcast %26 : vector<1x128xf32> to vector<8x128xf32>
    %641 = arith.subf %593, %640 : vector<8x128xf32>
    %642 = arith.mulf %637, %637 : vector<8x128xf32>
    %643 = arith.mulf %639, %639 : vector<8x128xf32>
    %644 = arith.addf %642, %643 : vector<8x128xf32>
    %645 = arith.mulf %641, %641 : vector<8x128xf32>
    %646 = arith.addf %644, %645 : vector<8x128xf32>
    %cst_57 = arith.constant -1.250000e+01 : f32
    %647 = vector.broadcast %cst_57 : f32 to vector<8x128xf32>
    %648 = arith.mulf %646, %647 : vector<8x128xf32>
    %649 = math.exp %648 : vector<8x128xf32>
    %650 = arith.mulf %649, %602 : vector<8x128xf32>
    %651 = arith.addf %561, %650 : vector<8x128xf32>
    %652 = vector.broadcast %28 : vector<1x128xf32> to vector<8x128xf32>
    %653 = arith.subf %585, %652 : vector<8x128xf32>
    %654 = vector.broadcast %30 : vector<1x128xf32> to vector<8x128xf32>
    %655 = arith.subf %589, %654 : vector<8x128xf32>
    %656 = vector.broadcast %32 : vector<1x128xf32> to vector<8x128xf32>
    %657 = arith.subf %593, %656 : vector<8x128xf32>
    %658 = arith.mulf %653, %653 : vector<8x128xf32>
    %659 = arith.mulf %655, %655 : vector<8x128xf32>
    %660 = arith.addf %658, %659 : vector<8x128xf32>
    %661 = arith.mulf %657, %657 : vector<8x128xf32>
    %662 = arith.addf %660, %661 : vector<8x128xf32>
    %cst_58 = arith.constant -1.250000e+01 : f32
    %663 = vector.broadcast %cst_58 : f32 to vector<8x128xf32>
    %664 = arith.mulf %662, %663 : vector<8x128xf32>
    %665 = math.exp %664 : vector<8x128xf32>
    %666 = arith.mulf %665, %602 : vector<8x128xf32>
    %667 = arith.addf %577, %666 : vector<8x128xf32>
    %c7_i32 = arith.constant 7 : i32
    %c8_i32_59 = arith.constant 8 : i32
    %668 = arith.muli %c7_i32, %c8_i32_59 : i32
    %669 = tpu.assume_multiple %668, 8 : i32
    %670 = arith.index_cast %669 : i32 to index
    %c0_60 = arith.constant 0 : index
    %671 = vector.load %arg3[%670, %c0_60] : memref<64x3xf32, #tpu.memory_space<vmem>>, vector<8x3xf32>
    %672 = vector.extract_strided_slice %671 {offsets = [0, 0], sizes = [8, 1], strides = [1, 1]} : vector<8x3xf32> to vector<8x1xf32>
    %673 = vector.broadcast %672 : vector<8x1xf32> to vector<8x128xf32>
    %674 = vector.broadcast %6 : vector<1x128xf32> to vector<8x128xf32>
    %675 = arith.subf %673, %674 : vector<8x128xf32>
    %676 = vector.extract_strided_slice %671 {offsets = [0, 1], sizes = [8, 1], strides = [1, 1]} : vector<8x3xf32> to vector<8x1xf32>
    %677 = vector.broadcast %676 : vector<8x1xf32> to vector<8x128xf32>
    %678 = vector.broadcast %7 : vector<1x128xf32> to vector<8x128xf32>
    %679 = arith.subf %677, %678 : vector<8x128xf32>
    %680 = vector.extract_strided_slice %671 {offsets = [0, 2], sizes = [8, 1], strides = [1, 1]} : vector<8x3xf32> to vector<8x1xf32>
    %681 = vector.broadcast %680 : vector<8x1xf32> to vector<8x128xf32>
    %682 = vector.broadcast %8 : vector<1x128xf32> to vector<8x128xf32>
    %683 = arith.subf %681, %682 : vector<8x128xf32>
    %684 = arith.mulf %675, %675 : vector<8x128xf32>
    %685 = arith.mulf %679, %679 : vector<8x128xf32>
    %686 = arith.addf %684, %685 : vector<8x128xf32>
    %687 = arith.mulf %683, %683 : vector<8x128xf32>
    %688 = arith.addf %686, %687 : vector<8x128xf32>
    %cst_61 = arith.constant 2.500000e-01 : f32
    %689 = vector.broadcast %cst_61 : f32 to vector<8x128xf32>
    %690 = arith.cmpf olt, %688, %689 : vector<8x128xf32>
    %691 = arith.extui %690 : vector<8x128xi1> to vector<8x128xi32>
    %692 = arith.sitofp %691 : vector<8x128xi32> to vector<8x128xf32>
    %693 = arith.addf %603, %692 : vector<8x128xf32>
    %694 = vector.broadcast %10 : vector<1x128xf32> to vector<8x128xf32>
    %695 = arith.subf %675, %694 : vector<8x128xf32>
    %696 = vector.broadcast %12 : vector<1x128xf32> to vector<8x128xf32>
    %697 = arith.subf %679, %696 : vector<8x128xf32>
    %698 = vector.broadcast %14 : vector<1x128xf32> to vector<8x128xf32>
    %699 = arith.subf %683, %698 : vector<8x128xf32>
    %700 = arith.mulf %695, %695 : vector<8x128xf32>
    %701 = arith.mulf %697, %697 : vector<8x128xf32>
    %702 = arith.addf %700, %701 : vector<8x128xf32>
    %703 = arith.mulf %699, %699 : vector<8x128xf32>
    %704 = arith.addf %702, %703 : vector<8x128xf32>
    %cst_62 = arith.constant -1.250000e+01 : f32
    %705 = vector.broadcast %cst_62 : f32 to vector<8x128xf32>
    %706 = arith.mulf %704, %705 : vector<8x128xf32>
    %707 = math.exp %706 : vector<8x128xf32>
    %708 = arith.mulf %707, %692 : vector<8x128xf32>
    %709 = arith.addf %619, %708 : vector<8x128xf32>
    %710 = vector.broadcast %16 : vector<1x128xf32> to vector<8x128xf32>
    %711 = arith.subf %675, %710 : vector<8x128xf32>
    %712 = vector.broadcast %18 : vector<1x128xf32> to vector<8x128xf32>
    %713 = arith.subf %679, %712 : vector<8x128xf32>
    %714 = vector.broadcast %20 : vector<1x128xf32> to vector<8x128xf32>
    %715 = arith.subf %683, %714 : vector<8x128xf32>
    %716 = arith.mulf %711, %711 : vector<8x128xf32>
    %717 = arith.mulf %713, %713 : vector<8x128xf32>
    %718 = arith.addf %716, %717 : vector<8x128xf32>
    %719 = arith.mulf %715, %715 : vector<8x128xf32>
    %720 = arith.addf %718, %719 : vector<8x128xf32>
    %cst_63 = arith.constant -1.250000e+01 : f32
    %721 = vector.broadcast %cst_63 : f32 to vector<8x128xf32>
    %722 = arith.mulf %720, %721 : vector<8x128xf32>
    %723 = math.exp %722 : vector<8x128xf32>
    %724 = arith.mulf %723, %692 : vector<8x128xf32>
    %725 = arith.addf %635, %724 : vector<8x128xf32>
    %726 = vector.broadcast %22 : vector<1x128xf32> to vector<8x128xf32>
    %727 = arith.subf %675, %726 : vector<8x128xf32>
    %728 = vector.broadcast %24 : vector<1x128xf32> to vector<8x128xf32>
    %729 = arith.subf %679, %728 : vector<8x128xf32>
    %730 = vector.broadcast %26 : vector<1x128xf32> to vector<8x128xf32>
    %731 = arith.subf %683, %730 : vector<8x128xf32>
    %732 = arith.mulf %727, %727 : vector<8x128xf32>
    %733 = arith.mulf %729, %729 : vector<8x128xf32>
    %734 = arith.addf %732, %733 : vector<8x128xf32>
    %735 = arith.mulf %731, %731 : vector<8x128xf32>
    %736 = arith.addf %734, %735 : vector<8x128xf32>
    %cst_64 = arith.constant -1.250000e+01 : f32
    %737 = vector.broadcast %cst_64 : f32 to vector<8x128xf32>
    %738 = arith.mulf %736, %737 : vector<8x128xf32>
    %739 = math.exp %738 : vector<8x128xf32>
    %740 = arith.mulf %739, %692 : vector<8x128xf32>
    %741 = arith.addf %651, %740 : vector<8x128xf32>
    %742 = vector.broadcast %28 : vector<1x128xf32> to vector<8x128xf32>
    %743 = arith.subf %675, %742 : vector<8x128xf32>
    %744 = vector.broadcast %30 : vector<1x128xf32> to vector<8x128xf32>
    %745 = arith.subf %679, %744 : vector<8x128xf32>
    %746 = vector.broadcast %32 : vector<1x128xf32> to vector<8x128xf32>
    %747 = arith.subf %683, %746 : vector<8x128xf32>
    %748 = arith.mulf %743, %743 : vector<8x128xf32>
    %749 = arith.mulf %745, %745 : vector<8x128xf32>
    %750 = arith.addf %748, %749 : vector<8x128xf32>
    %751 = arith.mulf %747, %747 : vector<8x128xf32>
    %752 = arith.addf %750, %751 : vector<8x128xf32>
    %cst_65 = arith.constant -1.250000e+01 : f32
    %753 = vector.broadcast %cst_65 : f32 to vector<8x128xf32>
    %754 = arith.mulf %752, %753 : vector<8x128xf32>
    %755 = math.exp %754 : vector<8x128xf32>
    %756 = arith.mulf %755, %692 : vector<8x128xf32>
    %757 = arith.addf %667, %756 : vector<8x128xf32>
    %c8_i32_66 = arith.constant 8 : i32
    %c0_67 = arith.constant 0 : index
    %c0_68 = arith.constant 0 : index
    %758 = vector.load %arg11[%c0_67, %c0_68] : memref<1x128xf32, #tpu.memory_space<vmem>>, vector<1x128xf32>
    %cst_69 = arith.constant dense<0.000000e+00> : vector<128xf32>
    %759 = vector.multi_reduction <add>, %693, %cst_69 [0] : vector<8x128xf32> to vector<128xf32>
    %760 = vector.shape_cast %759 : vector<128xf32> to vector<1x128xf32>
    %761 = arith.addf %758, %760 : vector<1x128xf32>
    %c0_70 = arith.constant 0 : index
    %c0_71 = arith.constant 0 : index
    %762 = vector.load %arg11[%c0_70, %c0_71] : memref<1x128xf32, #tpu.memory_space<vmem>>, vector<1x128xf32>
    tpu.vector_store %arg11[%c0_70, %c0_71], %761 {strides = array<i32>} : memref<1x128xf32, #tpu.memory_space<vmem>>, vector<1x128xf32>,
    %cst_72 = arith.constant dense<0.000000e+00> : vector<128xf32>
    %763 = vector.multi_reduction <add>, %709, %cst_72 [0] : vector<8x128xf32> to vector<128xf32>
    %764 = vector.shape_cast %763 : vector<128xf32> to vector<1x128xf32>
    %cst_73 = arith.constant dense<0.000000e+00> : vector<128xf32>
    %765 = vector.multi_reduction <add>, %725, %cst_73 [0] : vector<8x128xf32> to vector<128xf32>
    %766 = vector.shape_cast %765 : vector<128xf32> to vector<1x128xf32>
    %cst_74 = arith.constant dense<0.000000e+00> : vector<128xf32>
    %767 = vector.multi_reduction <add>, %741, %cst_74 [0] : vector<8x128xf32> to vector<128xf32>
    %768 = vector.shape_cast %767 : vector<128xf32> to vector<1x128xf32>
    %cst_75 = arith.constant dense<0.000000e+00> : vector<128xf32>
    %769 = vector.multi_reduction <add>, %757, %cst_75 [0] : vector<8x128xf32> to vector<128xf32>
    %770 = vector.shape_cast %769 : vector<128xf32> to vector<1x128xf32>
    %771 = tpu.concatenate %764, %766, %768, %770 in 0 : vector<1x128xf32>, vector<1x128xf32>, vector<1x128xf32>, vector<1x128xf32> -> vector<4x128xf32>
    %c0_76 = arith.constant 0 : index
    %c0_77 = arith.constant 0 : index
    %772 = vector.load %arg10[%c0_76, %c0_77] : memref<4x128xf32, #tpu.memory_space<vmem>>, vector<4x128xf32>
    %773 = arith.addf %772, %771 : vector<4x128xf32>
    %c0_78 = arith.constant 0 : index
    %c0_79 = arith.constant 0 : index
    %774 = vector.load %arg10[%c0_78, %c0_79] : memref<4x128xf32, #tpu.memory_space<vmem>>, vector<4x128xf32>
    tpu.vector_store %arg10[%c0_78, %c0_79], %773 {strides = array<i32>} : memref<4x128xf32, #tpu.memory_space<vmem>>, vector<4x128xf32>,
    %c0_i32_80 = arith.constant 0 : i32
    %775 = arith.cmpi eq, %arg2, %c0_i32_80 : i32
    %776 = arith.extui %775 : i1 to i32
    %c0_i32_81 = arith.constant 0 : i32
    %777 = arith.cmpi ne, %776, %c0_i32_81 : i32
    scf.if %777 {
      %c0_82 = arith.constant 0 : index
      %c0_83 = arith.constant 0 : index
      %778 = vector.load %arg11[%c0_82, %c0_83] : memref<1x128xf32, #tpu.memory_space<vmem>>, vector<1x128xf32>
      %c0_84 = arith.constant 0 : index
      %c0_85 = arith.constant 0 : index
      %779 = vector.load %arg10[%c0_84, %c0_85] : memref<4x128xf32, #tpu.memory_space<vmem>>, vector<4x128xf32>
      %cst_86 = arith.constant 1.000000e+00 : f32
      %780 = vector.broadcast %cst_86 : f32 to vector<1x128xf32>
      %781 = arith.addf %778, %780 : vector<1x128xf32>
      %cst_87 = arith.constant 1.000000e+00 : f32
      %782 = vector.broadcast %cst_87 : f32 to vector<1x128xf32>
      %783 = arith.divf %782, %781 : vector<1x128xf32>
      %784 = vector.broadcast %783 : vector<1x128xf32> to vector<4x128xf32>
      %785 = arith.mulf %779, %784 : vector<4x128xf32>
      %c0_88 = arith.constant 0 : index
      %c0_89 = arith.constant 0 : index
      %786 = vector.load %arg6[%c0_88, %c0_89] : memref<8x4xf32, #tpu.memory_space<vmem>>, vector<8x4xf32>
      %cst_90 = arith.constant 0.000000e+00 : f32
      %787 = vector.broadcast %cst_90 : f32 to vector<8x128xf32>
      %788 = vector.extract_strided_slice %786 {offsets = [0, 0], sizes = [8, 1], strides = [1, 1]} : vector<8x4xf32> to vector<8x1xf32>
      %789 = vector.extract_strided_slice %785 {offsets = [0, 0], sizes = [1, 128], strides = [1, 1]} : vector<4x128xf32> to vector<1x128xf32>
      %790 = vector.broadcast %788 : vector<8x1xf32> to vector<8x128xf32>
      %791 = vector.broadcast %789 : vector<1x128xf32> to vector<8x128xf32>
      %792 = arith.mulf %790, %791 : vector<8x128xf32>
      %793 = arith.addf %787, %792 : vector<8x128xf32>
      %794 = vector.extract_strided_slice %786 {offsets = [0, 1], sizes = [8, 1], strides = [1, 1]} : vector<8x4xf32> to vector<8x1xf32>
      %795 = vector.extract_strided_slice %785 {offsets = [1, 0], sizes = [1, 128], strides = [1, 1]} : vector<4x128xf32> to vector<1x128xf32>
      %796 = vector.broadcast %794 : vector<8x1xf32> to vector<8x128xf32>
      %797 = vector.broadcast %795 : vector<1x128xf32> to vector<8x128xf32>
      %798 = arith.mulf %796, %797 : vector<8x128xf32>
      %799 = arith.addf %793, %798 : vector<8x128xf32>
      %800 = vector.extract_strided_slice %786 {offsets = [0, 2], sizes = [8, 1], strides = [1, 1]} : vector<8x4xf32> to vector<8x1xf32>
      %801 = vector.extract_strided_slice %785 {offsets = [2, 0], sizes = [1, 128], strides = [1, 1]} : vector<4x128xf32> to vector<1x128xf32>
      %802 = vector.broadcast %800 : vector<8x1xf32> to vector<8x128xf32>
      %803 = vector.broadcast %801 : vector<1x128xf32> to vector<8x128xf32>
      %804 = arith.mulf %802, %803 : vector<8x128xf32>
      %805 = arith.addf %799, %804 : vector<8x128xf32>
      %806 = vector.extract_strided_slice %786 {offsets = [0, 3], sizes = [8, 1], strides = [1, 1]} : vector<8x4xf32> to vector<8x1xf32>
      %807 = vector.extract_strided_slice %785 {offsets = [3, 0], sizes = [1, 128], strides = [1, 1]} : vector<4x128xf32> to vector<1x128xf32>
      %808 = vector.broadcast %806 : vector<8x1xf32> to vector<8x128xf32>
      %809 = vector.broadcast %807 : vector<1x128xf32> to vector<8x128xf32>
      %810 = arith.mulf %808, %809 : vector<8x128xf32>
      %811 = arith.addf %805, %810 : vector<8x128xf32>
      %c0_91 = arith.constant 0 : index
      %c0_92 = arith.constant 0 : index
      %812 = vector.load %arg7[%c0_91, %c0_92] : memref<8x1xf32, #tpu.memory_space<vmem>>, vector<8x1xf32>
      %813 = vector.broadcast %812 : vector<8x1xf32> to vector<8x128xf32>
      %814 = arith.addf %811, %813 : vector<8x128xf32>
      %c0_93 = arith.constant 0 : index
      %c0_94 = arith.constant 0 : index
      %c0_95 = arith.constant 0 : index
      %815 = vector.load %arg8[%c0_93, %c0_94, %c0_95] : memref<1x8x128xf32, #tpu.memory_space<vmem>>, vector<1x8x128xf32>
      %816 = vector.shape_cast %815 : vector<1x8x128xf32> to vector<8x128xf32>
      %817 = vector.shape_cast %814 : vector<8x128xf32> to vector<1x8x128xf32>
      tpu.vector_store %arg8[%c0_93, %c0_94, %c0_95], %817 {strides = array<i32>} : memref<1x8x128xf32, #tpu.memory_space<vmem>>, vector<1x8x128xf32>,
      %c0_96 = arith.constant 0 : index
      %c0_97 = arith.constant 0 : index
      %c0_98 = arith.constant 0 : index
      %818 = vector.load %arg9[%c0_96, %c0_97, %c0_98] : memref<1x1x128xf32, #tpu.memory_space<vmem>>, vector<1x1x128xf32>
      %819 = vector.shape_cast %818 : vector<1x1x128xf32> to vector<1x128xf32>
      %820 = vector.shape_cast %778 : vector<1x128xf32> to vector<1x1x128xf32>
      tpu.vector_store %arg9[%c0_96, %c0_97, %c0_98], %820 {strides = array<i32>} : memref<1x1x128xf32, #tpu.memory_space<vmem>>, vector<1x1x128xf32>,
    } else {
    }
    return
  }
  func.func @transform_0(%arg0: i32, %arg1: i32, %arg2: i32) -> (i32, i32) {
    %c0_i32 = arith.constant 0 : i32
    %c0_i32_0 = arith.constant 0 : i32
    return %arg2, %c0_i32 : i32, i32
  }
  func.func @transform_1(%arg0: i32, %arg1: i32, %arg2: i32) -> (i32, i32, i32) {
    %c0_i32 = arith.constant 0 : i32
    %c0_i32_0 = arith.constant 0 : i32
    return %arg0, %c0_i32, %arg1 : i32, i32, i32
  }
  func.func @transform_2(%arg0: i32, %arg1: i32, %arg2: i32) -> (i32, i32, i32) {
    %c0_i32 = arith.constant 0 : i32
    %c0_i32_0 = arith.constant 0 : i32
    %c0_i32_1 = arith.constant 0 : i32
    return %c0_i32, %c0_i32_0, %arg1 : i32, i32, i32
  }
  func.func @transform_3(%arg0: i32, %arg1: i32, %arg2: i32) -> (i32, i32) {
    %c0_i32 = arith.constant 0 : i32
    %c0_i32_0 = arith.constant 0 : i32
    %c0_i32_1 = arith.constant 0 : i32
    return %c0_i32, %c0_i32_0 : i32, i32
  }
  func.func @transform_4(%arg0: i32, %arg1: i32, %arg2: i32) -> (i32, i32) {
    %c0_i32 = arith.constant 0 : i32
    %c0_i32_0 = arith.constant 0 : i32
    %c0_i32_1 = arith.constant 0 : i32
    return %c0_i32, %c0_i32_0 : i32, i32
  }
  func.func @transform_5(%arg0: i32, %arg1: i32, %arg2: i32) -> (i32, i32, i32) {
    %c0_i32 = arith.constant 0 : i32
    %c0_i32_0 = arith.constant 0 : i32
    return %arg0, %c0_i32, %arg1 : i32, i32, i32
  }
  func.func @transform_6(%arg0: i32, %arg1: i32, %arg2: i32) -> (i32, i32, i32) {
    %c0_i32 = arith.constant 0 : i32
    %c0_i32_0 = arith.constant 0 : i32
    return %arg0, %c0_i32, %arg1 : i32, i32, i32
  }
}

</mosaic_0001>

<llo_original>
// kernel: tpu_custom_call.1
$region0: #{tpu_custom_call.1}
  #allocation0 [shape = 'u32[]', space=smem, size = 0x4, offset = 0x4, fixed_abs, tag = 'smem constant byte address 0x4 - core index']
  #allocation1 [shape = 'u32[144,128]{1,0:T(1,128)}', space=vmem, size = 0x12000, scoped, tag = 'internal scratch']
  #allocation2 [shape = 'f32[4,128]{1,0:T(4,128)}', space=vmem, size = 0x800, scoped, tag = 'scratch operand']
  #allocation3 [shape = 'f32[1,128]{1,0:T(1,128)}', space=vmem, size = 0x200, scoped, tag = 'scratch operand']
  %s0 = inlined_call_operand.vmem [shape: f32[64,3], index: 0, kind: input, shape index: {}]
  %s1 = inlined_call_operand.vmem [shape: f32[2,3,128], index: 1, kind: input, shape index: {}]
  %s2 = inlined_call_operand.vmem [shape: f32[3,4,128], index: 2, kind: input, shape index: {}]
  %s3 = inlined_call_operand.vmem [shape: f32[8,4], index: 3, kind: input, shape index: {}]
  %s4 = inlined_call_operand.vmem [shape: f32[8,1], index: 4, kind: input, shape index: {}]
  %s5 = inlined_call_operand.hbm [shape: f32[2,8,128], index: 5, kind: output, shape index: {0}]
  %s6 = inlined_call_operand.hbm [shape: f32[2,1,128], index: 6, kind: output, shape index: {1}]
  %7 = xla_tuple %s5, %s6
  %s8 = sld [smem:[#allocation0]]
  $region69: #{tpu_custom_call.1} parent=0
    _
  %s10 = ssub.s32 1, %s8
  %s11 = scalar_select 0, %s10, %s8
  $region1: #{tpu_custom_call.1} parent=0
    #allocation4 [shape = 'u8[8192]{0}', space=vmem, size = 0x2000, scoped, tag = 'output window, operand 0']
    #allocation5 [shape = 's32[2]{0}', space=sflag, size = 0x8, scoped, tag = 'scoped memory for tpu_custom_call.1']
    #allocation6 [shape = 'u8[1024]{0}', space=vmem, size = 0x400, scoped, tag = 'output window, operand 1']
    #allocation7 [shape = 's32[2]{0}', space=sflag, size = 0x8, scoped, tag = 'scoped memory for tpu_custom_call.1']
    %12 = vsyncpa [#allocation5], 0
    %s13 = scalar_lea.sflag [#allocation5], 1
    %14 = vsyncpa %s13, 0
    %15 = vsyncpa [#allocation7], 0
    %s16 = scalar_lea.sflag [#allocation7], 1
    %17 = vsyncpa %s16, 0
    loop: start=0, step=1, limit=4
    $region2: #{tpu_custom_call.1} parent=1 // loop_pre_header
      _
    $region3: #{tpu_custom_call.1} parent=1 // loop_header
      %s19 = sphi 0, %s23
      %p20 = scmp.ge.s32.totalorder %s19, 4
      %s26 = sphi 0, %s45
      %s27 = sphi 0, %s41
      %s28 = sphi 0, %s37
      %s29 = sphi 0, %s26
      %s30 = sphi 0, %s27
      %s31 = sphi 0, %s28
      %s32 = sphi 0, %s29
      %s33 = sphi 0, %s30
      %s34 = sphi 0, %s31
      %s48 = sphi 0, %s50
      %s51 = sphi 0, %s48
      %s52 = sphi 0, %s51
      %s68 = sphi 0, %s52
      %s76 = sphi 0, %s78
      %s79 = sphi 0, %s76
      %s80 = sphi 0, %s79
      %s96 = sphi 0, %s80
      %s102 = sphi 0, %s104
      %s105 = sphi 0, %s102
      %s106 = sphi 0, %s105
      %s122 = sphi 0, %s106
      %s126 = sphi 0, %s126
      %s128 = sphi 0, %s126
      %s129 = sphi 0, %s128
      %s143 = sphi 0, %s129
      %s147 = sphi 0, %s147
      %s149 = sphi 0, %s147
      %s150 = sphi 0, %s149
      %s164 = sphi 0, %s150
      %s172 = sphi 0, %s174
      %s175 = sphi 0, %s172
      %s176 = sphi 0, %s175
      %s192 = sphi 0, %s176
      %s200 = sphi 0, %s202
      %s203 = sphi 0, %s200
      %s204 = sphi 0, %s203
      %s220 = sphi 0, %s204
    $region4: #{tpu_custom_call.1} parent=1 // loop_header_branch
      %22 = sbr.rel (%p20) target = $region8
    $region5: #{tpu_custom_call.1} parent=1 // loop_body
      %s24 = ssub.s32 %s19, 1
      %s25 = ssub.s32 %s19, 2
      %s35 = sadd.s32 1, %s28
      %p36 = scmp.ge.s32.totalorder %s35, 1
      %s37 = scalar_select %p36, 0, %s35
      %s38 = sadd.s32 1, %s27
      %s39 = scalar_select %p36, %s38, %s27
      %p40 = scmp.ge.s32.totalorder %s39, 1
      %s41 = scalar_select %p40, 0, %s39
      %s42 = sadd.s32 1, %s26
      %s43 = scalar_select %p40, %s42, %s26
      %p44 = scmp.ge.s32.totalorder %s43, 2
      %s45 = scalar_select %p44, 0, %s43
      %s46 = ssub.s32 %s28, %s37
      %p47 = scmp.eq.s32.totalorder %s46, 0
      %s49 = sadd.s32 %s48, 1
      %s50 = scalar_select %p47, %s48, %s49
      %p53 = pneg %p47
      %p54 = scmp.eq.s32.totalorder %s19, 1
      %p55 = por %p53, %p54
      %p56 = scmp.ne.s32.totalorder %s48, %s51
      %p57 = scmp.eq.s32.totalorder %s19, 0
      %p58 = por %p56, %p57
      %p59 = scmp.ne.s32.totalorder %s48, %s51
      %p60 = scmp.eq.s32.totalorder %s24, 1
      %p61 = por %p59, %p60
      %p62 = scmp.ne.s32.totalorder %s51, %s52
      %p63 = scmp.eq.s32.totalorder %s24, 0
      %p64 = por %p62, %p63
      %p65 = scmp.ne.s32.totalorder %s51, %s52
      %p66 = scmp.eq.s32.totalorder %s25, 1
      %p67 = por %p65, %p66
      %p69 = scmp.ne.s32.totalorder %s52, %s68
      %p70 = scmp.eq.s32.totalorder %s25, 0
      %p71 = por %p69, %p70
      %s72 = ssub.s32 %s26, %s45
      %s73 = ssub.s32 %s27, %s41
      %s74 = sor.u32 %s72, %s73
      %p75 = scmp.eq.s32.totalorder %s74, 0
      %s77 = sadd.s32 %s76, 1
      %s78 = scalar_select %p75, %s76, %s77
      %p81 = pneg %p75
      %p82 = scmp.eq.s32.totalorder %s19, 1
      %p83 = por %p81, %p82
      %p84 = scmp.ne.s32.totalorder %s76, %s79
      %p85 = scmp.eq.s32.totalorder %s19, 0
      %p86 = por %p84, %p85
      %p87 = scmp.ne.s32.totalorder %s76, %s79
      %p88 = scmp.eq.s32.totalorder %s24, 1
      %p89 = por %p87, %p88
      %p90 = scmp.ne.s32.totalorder %s79, %s80
      %p91 = scmp.eq.s32.totalorder %s24, 0
      %p92 = por %p90, %p91
      %p93 = scmp.ne.s32.totalorder %s79, %s80
      %p94 = scmp.eq.s32.totalorder %s25, 1
      %p95 = por %p93, %p94
      %p97 = scmp.ne.s32.totalorder %s80, %s96
      %p98 = scmp.eq.s32.totalorder %s25, 0
      %p99 = por %p97, %p98
      %s100 = ssub.s32 %s27, %s41
      %p101 = scmp.eq.s32.totalorder %s100, 0
      %s103 = sadd.s32 %s102, 1
      %s104 = scalar_select %p101, %s102, %s103
      %p107 = pneg %p101
      %p108 = scmp.eq.s32.totalorder %s19, 1
      %p109 = por %p107, %p108
      %p110 = scmp.ne.s32.totalorder %s102, %s105
      %p111 = scmp.eq.s32.totalorder %s19, 0
      %p112 = por %p110, %p111
      %p113 = scmp.ne.s32.totalorder %s102, %s105
      %p114 = scmp.eq.s32.totalorder %s24, 1
      %p115 = por %p113, %p114
      %p116 = scmp.ne.s32.totalorder %s105, %s106
      %p117 = scmp.eq.s32.totalorder %s24, 0
      %p118 = por %p116, %p117
      %p119 = scmp.ne.s32.totalorder %s105, %s106
      %p120 = scmp.eq.s32.totalorder %s25, 1
      %p121 = por %p119, %p120
      %p123 = scmp.ne.s32.totalorder %s106, %s122
      %p124 = scmp.eq.s32.totalorder %s25, 0
      %p125 = por %p123, %p124
      %s127 = sadd.s32 %s126, 1
      %p130 = scmp.eq.s32.totalorder %s19, 1
      %p131 = scmp.ne.s32.totalorder %s126, %s128
      %p132 = scmp.eq.s32.totalorder %s19, 0
      %p133 = por %p131, %p132
      %p134 = scmp.ne.s32.totalorder %s126, %s128
      %p135 = scmp.eq.s32.totalorder %s24, 1
      %p136 = por %p134, %p135
      %p137 = scmp.ne.s32.totalorder %s128, %s129
      %p138 = scmp.eq.s32.totalorder %s24, 0
      %p139 = por %p137, %p138
      %p140 = scmp.ne.s32.totalorder %s128, %s129
      %p141 = scmp.eq.s32.totalorder %s25, 1
      %p142 = por %p140, %p141
      %p144 = scmp.ne.s32.totalorder %s129, %s143
      %p145 = scmp.eq.s32.totalorder %s25, 0
      %p146 = por %p144, %p145
      %s148 = sadd.s32 %s147, 1
      %p151 = scmp.eq.s32.totalorder %s19, 1
      %p152 = scmp.ne.s32.totalorder %s147, %s149
      %p153 = scmp.eq.s32.totalorder %s19, 0
      %p154 = por %p152, %p153
      %p155 = scmp.ne.s32.totalorder %s147, %s149
      %p156 = scmp.eq.s32.totalorder %s24, 1
      %p157 = por %p155, %p156
      %p158 = scmp.ne.s32.totalorder %s149, %s150
      %p159 = scmp.eq.s32.totalorder %s24, 0
      %p160 = por %p158, %p159
      %p161 = scmp.ne.s32.totalorder %s149, %s150
      %p162 = scmp.eq.s32.totalorder %s25, 1
      %p163 = por %p161, %p162
      %p165 = scmp.ne.s32.totalorder %s150, %s164
      %p166 = scmp.eq.s32.totalorder %s25, 0
      %p167 = por %p165, %p166
      %s168 = ssub.s32 %s26, %s45
      %s169 = ssub.s32 %s27, %s41
      %s170 = sor.u32 %s168, %s169
      %p171 = scmp.eq.s32.totalorder %s170, 0
      %s173 = sadd.s32 %s172, 1
      %s174 = scalar_select %p171, %s172, %s173
      %p177 = pneg %p171
      %p178 = scmp.eq.s32.totalorder %s19, 1
      %p179 = por %p177, %p178
      %p180 = scmp.ne.s32.totalorder %s172, %s175
      %p181 = scmp.eq.s32.totalorder %s19, 0
      %p182 = por %p180, %p181
      %p183 = scmp.ne.s32.totalorder %s172, %s175
      %p184 = scmp.eq.s32.totalorder %s24, 1
      %p185 = por %p183, %p184
      %p186 = scmp.ne.s32.totalorder %s175, %s176
      %p187 = scmp.eq.s32.totalorder %s24, 0
      %p188 = por %p186, %p187
      %p189 = scmp.ne.s32.totalorder %s175, %s176
      %p190 = scmp.eq.s32.totalorder %s25, 1
      %p191 = por %p189, %p190
      %p193 = scmp.ne.s32.totalorder %s176, %s192
      %p194 = scmp.eq.s32.totalorder %s25, 0
      %p195 = por %p193, %p194
      %s196 = ssub.s32 %s26, %s45
      %s197 = ssub.s32 %s27, %s41
      %s198 = sor.u32 %s196, %s197
      %p199 = scmp.eq.s32.totalorder %s198, 0
      %s201 = sadd.s32 %s200, 1
      %s202 = scalar_select %p199, %s200, %s201
      %p205 = pneg %p199
      %p206 = scmp.eq.s32.totalorder %s19, 1
      %p207 = por %p205, %p206
      %p208 = scmp.ne.s32.totalorder %s200, %s203
      %p209 = scmp.eq.s32.totalorder %s19, 0
      %p210 = por %p208, %p209
      %p211 = scmp.ne.s32.totalorder %s200, %s203
      %p212 = scmp.eq.s32.totalorder %s24, 1
      %p213 = por %p211, %p212
      %p214 = scmp.ne.s32.totalorder %s203, %s204
      %p215 = scmp.eq.s32.totalorder %s24, 0
      %p216 = por %p214, %p215
      %p217 = scmp.ne.s32.totalorder %s203, %s204
      %p218 = scmp.eq.s32.totalorder %s25, 1
      %p219 = por %p217, %p218
      %p221 = scmp.ne.s32.totalorder %s204, %s220
      %p222 = scmp.eq.s32.totalorder %s25, 0
      %p223 = por %p221, %p222
      %p224 = scmp.le.s32.totalorder 1, %s19
      %p225 = scmp.lt.s32.totalorder %s19, 3
      %p226 = pnand %p224, %p225
      %p227 = pneg %p226
      // Predicated region
      $region9: #{tpu_custom_call.1} parent=5 // pred_check
        _
      $region10: #{tpu_custom_call.1} parent=5 // pred_check_branch
        %229 = sbr.rel (%p226) target = $region12
      $region11: #{tpu_custom_call.1} parent=5 // pred_region
        %s230 = ssub.s32 %s19, 1
        // Predicated region
        $region13: #{tpu_custom_call.1} parent=11 // pred_check
          %p231 = pneg %p64
        $region14: #{tpu_custom_call.1} parent=11 // pred_check_branch
          %233 = sbr.rel (%p231) target = $region16
        $region15: #{tpu_custom_call.1} parent=11 // pred_region
          %s234 = smul.u32 8, %s31
          %p235 = scmp.lt.s32.totalorder %s234, 7
          %s236 = scalar_select %p235, %s234, 7
          %s237 = smul.addr %s236, 8
          %s238 = scalar_lea.vmem %s0, %s237
          %s239 = smul.u32 8, %s31
        $region16: #{tpu_custom_call.1} parent=11 // pred_fallthru
          _
        // Predicated region
        $region17: #{tpu_custom_call.1} parent=11 // pred_check
          %p240 = pneg %p118
        $region18: #{tpu_custom_call.1} parent=11 // pred_check_branch
          %242 = sbr.rel (%p240) target = $region20
        $region19: #{tpu_custom_call.1} parent=11 // pred_region
          %p243 = scmp.lt.s32.totalorder %s30, 0
          %s244 = scalar_select %p243, %s30, 0
          %s245 = smul.addr %s244, 4
          %s246 = scalar_lea.vmem %s2, %s245
        $region20: #{tpu_custom_call.1} parent=11 // pred_fallthru
          _
        // Predicated region
        $region21: #{tpu_custom_call.1} parent=11 // pred_check
          %p247 = pneg %p139
        $region22: #{tpu_custom_call.1} parent=11 // pred_check_branch
          %249 = sbr.rel (%p247) target = $region24
        $region23: #{tpu_custom_call.1} parent=11 // pred_region
          _
        $region24: #{tpu_custom_call.1} parent=11 // pred_fallthru
          _
        // Predicated region
        $region25: #{tpu_custom_call.1} parent=11 // pred_check
          %p250 = pneg %p160
        $region26: #{tpu_custom_call.1} parent=11 // pred_check_branch
          %252 = sbr.rel (%p250) target = $region28
        $region27: #{tpu_custom_call.1} parent=11 // pred_region
          _
        $region28: #{tpu_custom_call.1} parent=11 // pred_fallthru
          _
      $region12: #{tpu_custom_call.1} parent=5 // pred_fallthru
        _
      %p253 = scmp.lt.s32.totalorder %s19, 2
      // Predicated region
      $region29: #{tpu_custom_call.1} parent=5 // pred_check
        %p254 = pneg %p253
      $region30: #{tpu_custom_call.1} parent=5 // pred_check_branch
        %256 = sbr.rel (%p254) target = $region32
      $region31: #{tpu_custom_call.1} parent=5 // pred_region
        // Predicated region
        $region33: #{tpu_custom_call.1} parent=31 // pred_check
          %p257 = pneg %p86
        $region34: #{tpu_custom_call.1} parent=31 // pred_check_branch
          %259 = sbr.rel (%p257) target = $region36
        $region35: #{tpu_custom_call.1} parent=31 // pred_region
          %p260 = scmp.lt.s32.totalorder %s26, 1
          %s261 = scalar_select %p260, %s26, 1
          %p262 = scmp.lt.s32.totalorder %s27, 0
          %s263 = scalar_select %p262, %s27, 0
          %s264 = sadd.s32 %s263, %s261
          %s265 = smul.addr %s264, 4
          %s266 = scalar_lea.vmem %s1, %s265
        $region36: #{tpu_custom_call.1} parent=31 // pred_fallthru
          _
      $region32: #{tpu_custom_call.1} parent=5 // pred_fallthru
        _
      %p267 = scmp.le.s32.totalorder 1, %s19
      %p268 = scmp.lt.s32.totalorder %s19, 3
      %p269 = pnand %p267, %p268
      %p270 = pneg %p269
      // Predicated region
      $region37: #{tpu_custom_call.1} parent=5 // pred_check
        _
      $region38: #{tpu_custom_call.1} parent=5 // pred_check_branch
        %272 = sbr.rel (%p269) target = $region40
      $region39: #{tpu_custom_call.1} parent=5 // pred_region
        %s273 = ssub.s32 %s19, 1
        %s274 = smul.u32 8, %s31
        %p275 = scmp.lt.s32.totalorder %s274, 7
        %s276 = scalar_select %p275, %s274, 7
        %s277 = smul.addr %s276, 8
        %s278 = scalar_lea.vmem %s0, %s277
        %p279 = pneg %p64
        %p280 = pneg %p61
        %p281 = scmp.lt.s32.totalorder %s29, 1
        %s282 = scalar_select %p281, %s29, 1
        %p283 = scmp.lt.s32.totalorder %s30, 0
        %s284 = scalar_select %p283, %s30, 0
        %s285 = sadd.s32 %s284, %s282
        %s286 = smul.addr %s285, 4
        %s287 = scalar_lea.vmem %s1, %s286
        %p288 = pneg %p92
        %p289 = pneg %p89
        %p290 = scmp.lt.s32.totalorder %s30, 0
        %s291 = scalar_select %p290, %s30, 0
        %s292 = smul.addr %s291, 4
        %s293 = scalar_lea.vmem %s2, %s292
        %p294 = pneg %p118
        %p295 = pneg %p115
        %p296 = pneg %p139
        %p297 = pneg %p136
        %p298 = pneg %p160
        %p299 = pneg %p157
        %p300 = pneg %p188
        %p301 = pneg %p185
        %s302 = sand.u32 %s175, 1
        %s303 = scalar_lea.sflag [#allocation5], %s302
        %s304 = sand.u32 %s175, 1
        %s305 = smul.addr %s304, 8
        %s306 = scalar_lea.vmem [#allocation4], %s305
        %p307 = pneg %p216
        %p308 = pneg %p213
        %s309 = sand.u32 %s203, 1
        %s310 = scalar_lea.sflag [#allocation7], %s309
        %s311 = sand.u32 %s203, 1
        %s312 = scalar_lea.vmem [#allocation6], %s311
        %s313 = smul.u32 8, %s31
        %p314 = scmp.lt.s32.totalorder %s313, 7
        %s315 = scalar_select %p314, %s313, 7
        %s316 = smul.addr %s315, 8
        %s317 = scalar_lea.vmem %s0, %s316
        %s318 = smul.u32 8, %s31
        %p319 = scmp.lt.s32.totalorder %s29, 1
        %s320 = scalar_select %p319, %s29, 1
        %p321 = scmp.lt.s32.totalorder %s30, 0
        %s322 = scalar_select %p321, %s30, 0
        %s323 = sadd.s32 %s322, %s320
        %s324 = smul.addr %s323, 4
        %s325 = scalar_lea.vmem %s1, %s324
        %p326 = scmp.lt.s32.totalorder %s30, 0
        %s327 = scalar_select %p326, %s30, 0
        %s328 = smul.addr %s327, 4
        %s329 = scalar_lea.vmem %s2, %s328
        %p330 = scmp.eq.s32.totalorder %s31, 0
        // Predicated region
        $region41: #{tpu_custom_call.1} parent=39 // pred_check
          %p331 = pneg %p330
        $region42: #{tpu_custom_call.1} parent=39 // pred_check_branch
          %333 = sbr.rel (%p331) target = $region44
        $region43: #{tpu_custom_call.1} parent=39 // pred_region
          %334 = vst [vmem:[#allocation2] sm:$0xf] 0.0
          %335 = vst [vmem:[#allocation3] sm:$0x1] 0.0
        $region44: #{tpu_custom_call.1} parent=39 // pred_fallthru
          _
        %v336 = vld [vmem:[%s325] sm:$0x7]
        %v337 = vld [vmem:[%s329] sm:$0xf]
        %v338 = vld [vmem:[%s329 + $0x4] sm:$0xf]
        %v339 = vld [vmem:[%s329 + $0x8] sm:$0xf]
        %v340 = vld [vmem:[%s317] sm:$0xff]
        %342 = vset.pattern.permute.xlu0 0
        %343 = vperm.xlu0 %342, %v340
        %v344 = vpop.permute.xlu0 %343
        %v346 = vlaneseq
        %v347 = vshrl.u32 %v346, 7
        %v348 = vsub.s32 0, %v347
        %v349 = vrot.slane %v336, %v348
        %v350 = vsub.f32 %v344, %v349
        %351 = vset.pattern.permute.xlu0 1
        %352 = vperm.xlu0 %351, %v340
        %v353 = vpop.permute.xlu0 %352
        %v355 = vlaneseq
        %v356 = vshrl.u32 %v355, 7
        %v357 = vsub.s32 1, %v356
        %v358 = vrot.slane %v336, %v357
        %v359 = vsub.f32 %v353, %v358
        %360 = vset.pattern.permute.xlu0 2
        %361 = vperm.xlu0 %360, %v340
        %v362 = vpop.permute.xlu0 %361
        %v364 = vlaneseq
        %v365 = vshrl.u32 %v364, 7
        %v366 = vsub.s32 2, %v365
        %v367 = vrot.slane %v336, %v366
        %v368 = vsub.f32 %v362, %v367
        %v369 = vmul.f32 %v350, %v350
        %v370 = vmul.f32 %v359, %v359
        %v371 = vadd.f32 %v369, %v370
        %v372 = vmul.f32 %v368, %v368
        %v373 = vadd.f32 %v371, %v372
        %vm374 = vcmp.lt.f32.partialorder %v373, 0.25
        %v375 = vsel %vm374, 1, 0
        %v376 = vcvt.s32.f32 %v375
        %v377 = vadd.f32 %v376, 0.0
        %v378 = vlaneseq
        %v379 = vshrl.u32 %v378, 7
        %v380 = vsub.s32 0, %v379
        %v381 = vrot.slane %v337, %v380
        %v382 = vsub.f32 %v350, %v381
        %v383 = vlaneseq
        %v384 = vshrl.u32 %v383, 7
        %v385 = vsub.s32 0, %v384
        %v386 = vrot.slane %v338, %v385
        %v387 = vsub.f32 %v359, %v386
        %v388 = vlaneseq
        %v389 = vshrl.u32 %v388, 7
        %v390 = vsub.s32 0, %v389
        %v391 = vrot.slane %v339, %v390
        %v392 = vsub.f32 %v368, %v391
        %v393 = vmul.f32 %v382, %v382
        %v394 = vmul.f32 %v387, %v387
        %v395 = vadd.f32 %v393, %v394
        %v396 = vmul.f32 %v392, %v392
        %v397 = vadd.f32 %v395, %v396
        %v398 = vmul.f32 %v397, -12.5
        %v399 = vmul.f32 %v398, 1.442695
        %v400 = vpow.pop %v399
        %v401 = vmul.f32 %v400, %v376
        %v402 = vadd.f32 %v401, 0.0
        %v403 = vlaneseq
        %v404 = vshrl.u32 %v403, 7
        %v405 = vsub.s32 1, %v404
        %v406 = vrot.slane %v337, %v405
        %v407 = vsub.f32 %v350, %v406
        %v408 = vlaneseq
        %v409 = vshrl.u32 %v408, 7
        %v410 = vsub.s32 1, %v409
        %v411 = vrot.slane %v338, %v410
        %v412 = vsub.f32 %v359, %v411
        %v413 = vlaneseq
        %v414 = vshrl.u32 %v413, 7
        %v415 = vsub.s32 1, %v414
        %v416 = vrot.slane %v339, %v415
        %v417 = vsub.f32 %v368, %v416
        %v418 = vmul.f32 %v407, %v407
        %v419 = vmul.f32 %v412, %v412
        %v420 = vadd.f32 %v418, %v419
        %v421 = vmul.f32 %v417, %v417
        %v422 = vadd.f32 %v420, %v421
        %v423 = vmul.f32 %v422, -12.5
        %v424 = vmul.f32 %v423, 1.442695
        %v425 = vpow.pop %v424
        %v426 = vmul.f32 %v425, %v376
        %v427 = vadd.f32 %v426, 0.0
        %v428 = vlaneseq
        %v429 = vshrl.u32 %v428, 7
        %v430 = vsub.s32 2, %v429
        %v431 = vrot.slane %v337, %v430
        %v432 = vsub.f32 %v350, %v431
        %v433 = vlaneseq
        %v434 = vshrl.u32 %v433, 7
        %v435 = vsub.s32 2, %v434
        %v436 = vrot.slane %v338, %v435
        %v437 = vsub.f32 %v359, %v436
        %v438 = vlaneseq
        %v439 = vshrl.u32 %v438, 7
        %v440 = vsub.s32 2, %v439
        %v441 = vrot.slane %v339, %v440
        %v442 = vsub.f32 %v368, %v441
        %v443 = vmul.f32 %v432, %v432
        %v444 = vmul.f32 %v437, %v437
        %v445 = vadd.f32 %v443, %v444
        %v446 = vmul.f32 %v442, %v442
        %v447 = vadd.f32 %v445, %v446
        %v448 = vmul.f32 %v447, -12.5
        %v449 = vmul.f32 %v448, 1.442695
        %v450 = vpow.pop %v449
        %v451 = vmul.f32 %v450, %v376
        %v452 = vadd.f32 %v451, 0.0
        %v453 = vlaneseq
        %v454 = vshrl.u32 %v453, 7
        %v455 = vsub.s32 3, %v454
        %v456 = vrot.slane %v337, %v455
        %v457 = vsub.f32 %v350, %v456
        %v458 = vlaneseq
        %v459 = vshrl.u32 %v458, 7
        %v460 = vsub.s32 3, %v459
        %v461 = vrot.slane %v338, %v460
        %v462 = vsub.f32 %v359, %v461
        %v463 = vlaneseq
        %v464 = vshrl.u32 %v463, 7
        %v465 = vsub.s32 3, %v464
        %v466 = vrot.slane %v339, %v465
        %v467 = vsub.f32 %v368, %v466
        %v468 = vmul.f32 %v457, %v457
        %v469 = vmul.f32 %v462, %v462
        %v470 = vadd.f32 %v468, %v469
        %v471 = vmul.f32 %v467, %v467
        %v472 = vadd.f32 %v470, %v471
        %v473 = vmul.f32 %v472, -12.5
        %v474 = vmul.f32 %v473, 1.442695
        %v475 = vpow.pop %v474
        %v476 = vmul.f32 %v475, %v376
        %v477 = vadd.f32 %v476, 0.0
        %s478 = scalar_lea.vmem %s317, 8
        %v479 = vld [vmem:[%s478] sm:$0xff]
        %481 = vset.pattern.permute.xlu0 0
        %482 = vperm.xlu0 %481, %v479
        %v483 = vpop.permute.xlu0 %482
        %v485 = vsub.f32 %v483, %v349
        %486 = vset.pattern.permute.xlu0 1
        %487 = vperm.xlu0 %486, %v479
        %v488 = vpop.permute.xlu0 %487
        %v490 = vsub.f32 %v488, %v358
        %491 = vset.pattern.permute.xlu0 2
        %492 = vperm.xlu0 %491, %v479
        %v493 = vpop.permute.xlu0 %492
        %v495 = vsub.f32 %v493, %v367
        %v496 = vmul.f32 %v485, %v485
        %v497 = vmul.f32 %v490, %v490
        %v498 = vadd.f32 %v496, %v497
        %v499 = vmul.f32 %v495, %v495
        %v500 = vadd.f32 %v498, %v499
        %vm501 = vcmp.lt.f32.partialorder %v500, 0.25
        %v502 = vsel %vm501, 1, 0
        %v503 = vcvt.s32.f32 %v502
        %v504 = vadd.f32 %v377, %v503
        %v505 = vsub.f32 %v485, %v381
        %v506 = vsub.f32 %v490, %v386
        %v507 = vsub.f32 %v495, %v391
        %v508 = vmul.f32 %v505, %v505
        %v509 = vmul.f32 %v506, %v506
        %v510 = vadd.f32 %v508, %v509
        %v511 = vmul.f32 %v507, %v507
        %v512 = vadd.f32 %v510, %v511
        %v513 = vmul.f32 %v512, -12.5
        %v514 = vmul.f32 %v513, 1.442695
        %v515 = vpow.pop %v514
        %v516 = vmul.f32 %v515, %v503
        %v517 = vadd.f32 %v402, %v516
        %v518 = vsub.f32 %v485, %v406
        %v519 = vsub.f32 %v490, %v411
        %v520 = vsub.f32 %v495, %v416
        %v521 = vmul.f32 %v518, %v518
        %v522 = vmul.f32 %v519, %v519
        %v523 = vadd.f32 %v521, %v522
        %v524 = vmul.f32 %v520, %v520
        %v525 = vadd.f32 %v523, %v524
        %v526 = vmul.f32 %v525, -12.5
        %v527 = vmul.f32 %v526, 1.442695
        %v528 = vpow.pop %v527
        %v529 = vmul.f32 %v528, %v503
        %v530 = vadd.f32 %v427, %v529
        %v531 = vsub.f32 %v485, %v431
        %v532 = vsub.f32 %v490, %v436
        %v533 = vsub.f32 %v495, %v441
        %v534 = vmul.f32 %v531, %v531
        %v535 = vmul.f32 %v532, %v532
        %v536 = vadd.f32 %v534, %v535
        %v537 = vmul.f32 %v533, %v533
        %v538 = vadd.f32 %v536, %v537
        %v539 = vmul.f32 %v538, -12.5
        %v540 = vmul.f32 %v539, 1.442695
        %v541 = vpow.pop %v540
        %v542 = vmul.f32 %v541, %v503
        %v543 = vadd.f32 %v452, %v542
        %v544 = vsub.f32 %v485, %v456
        %v545 = vsub.f32 %v490, %v461
        %v546 = vsub.f32 %v495, %v466
        %v547 = vmul.f32 %v544, %v544
        %v548 = vmul.f32 %v545, %v545
        %v549 = vadd.f32 %v547, %v548
        %v550 = vmul.f32 %v546, %v546
        %v551 = vadd.f32 %v549, %v550
        %v552 = vmul.f32 %v551, -12.5
        %v553 = vmul.f32 %v552, 1.442695
        %v554 = vpow.pop %v553
        %v555 = vmul.f32 %v554, %v503
        %v556 = vadd.f32 %v477, %v555
        %s557 = scalar_lea.vmem %s317, 16
        %v558 = vld [vmem:[%s557] sm:$0xff]
        %560 = vset.pattern.permute.xlu0 0
        %561 = vperm.xlu0 %560, %v558
        %v562 = vpop.permute.xlu0 %561
        %v564 = vsub.f32 %v562, %v349
        %565 = vset.pattern.permute.xlu0 1
        %566 = vperm.xlu0 %565, %v558
        %v567 = vpop.permute.xlu0 %566
        %v569 = vsub.f32 %v567, %v358
        %570 = vset.pattern.permute.xlu0 2
        %571 = vperm.xlu0 %570, %v558
        %v572 = vpop.permute.xlu0 %571
        %v574 = vsub.f32 %v572, %v367
        %v575 = vmul.f32 %v564, %v564
        %v576 = vmul.f32 %v569, %v569
        %v577 = vadd.f32 %v575, %v576
        %v578 = vmul.f32 %v574, %v574
        %v579 = vadd.f32 %v577, %v578
        %vm580 = vcmp.lt.f32.partialorder %v579, 0.25
        %v581 = vsel %vm580, 1, 0
        %v582 = vcvt.s32.f32 %v581
        %v583 = vadd.f32 %v504, %v582
        %v584 = vsub.f32 %v564, %v381
        %v585 = vsub.f32 %v569, %v386
        %v586 = vsub.f32 %v574, %v391
        %v587 = vmul.f32 %v584, %v584
        %v588 = vmul.f32 %v585, %v585
        %v589 = vadd.f32 %v587, %v588
        %v590 = vmul.f32 %v586, %v586
        %v591 = vadd.f32 %v589, %v590
        %v592 = vmul.f32 %v591, -12.5
        %v593 = vmul.f32 %v592, 1.442695
        %v594 = vpow.pop %v593
        %v595 = vmul.f32 %v594, %v582
        %v596 = vadd.f32 %v517, %v595
        %v597 = vsub.f32 %v564, %v406
        %v598 = vsub.f32 %v569, %v411
        %v599 = vsub.f32 %v574, %v416
        %v600 = vmul.f32 %v597, %v597
        %v601 = vmul.f32 %v598, %v598
        %v602 = vadd.f32 %v600, %v601
        %v603 = vmul.f32 %v599, %v599
        %v604 = vadd.f32 %v602, %v603
        %v605 = vmul.f32 %v604, -12.5
        %v606 = vmul.f32 %v605, 1.442695
        %v607 = vpow.pop %v606
        %v608 = vmul.f32 %v607, %v582
        %v609 = vadd.f32 %v530, %v608
        %v610 = vsub.f32 %v564, %v431
        %v611 = vsub.f32 %v569, %v436
        %v612 = vsub.f32 %v574, %v441
        %v613 = vmul.f32 %v610, %v610
        %v614 = vmul.f32 %v611, %v611
        %v615 = vadd.f32 %v613, %v614
        %v616 = vmul.f32 %v612, %v612
        %v617 = vadd.f32 %v615, %v616
        %v618 = vmul.f32 %v617, -12.5
        %v619 = vmul.f32 %v618, 1.442695
        %v620 = vpow.pop %v619
        %v621 = vmul.f32 %v620, %v582
        %v622 = vadd.f32 %v543, %v621
        %v623 = vsub.f32 %v564, %v456
        %v624 = vsub.f32 %v569, %v461
        %v625 = vsub.f32 %v574, %v466
        %v626 = vmul.f32 %v623, %v623
        %v627 = vmul.f32 %v624, %v624
        %v628 = vadd.f32 %v626, %v627
        %v629 = vmul.f32 %v625, %v625
        %v630 = vadd.f32 %v628, %v629
        %v631 = vmul.f32 %v630, -12.5
        %v632 = vmul.f32 %v631, 1.442695
        %v633 = vpow.pop %v632
        %v634 = vmul.f32 %v633, %v582
        %v635 = vadd.f32 %v556, %v634
        %s636 = scalar_lea.vmem %s317, 24
        %v637 = vld [vmem:[%s636] sm:$0xff]
        %639 = vset.pattern.permute.xlu0 0
        %640 = vperm.xlu0 %639, %v637
        %v641 = vpop.permute.xlu0 %640
        %v643 = vsub.f32 %v641, %v349
        %644 = vset.pattern.permute.xlu0 1
        %645 = vperm.xlu0 %644, %v637
        %v646 = vpop.permute.xlu0 %645
        %v648 = vsub.f32 %v646, %v358
        %649 = vset.pattern.permute.xlu0 2
        %650 = vperm.xlu0 %649, %v637
        %v651 = vpop.permute.xlu0 %650
        %v653 = vsub.f32 %v651, %v367
        %v654 = vmul.f32 %v643, %v643
        %v655 = vmul.f32 %v648, %v648
        %v656 = vadd.f32 %v654, %v655
        %v657 = vmul.f32 %v653, %v653
        %v658 = vadd.f32 %v656, %v657
        %vm659 = vcmp.lt.f32.partialorder %v658, 0.25
        %v660 = vsel %vm659, 1, 0
        %v661 = vcvt.s32.f32 %v660
        %v662 = vadd.f32 %v583, %v661
        %v663 = vsub.f32 %v643, %v381
        %v664 = vsub.f32 %v648, %v386
        %v665 = vsub.f32 %v653, %v391
        %v666 = vmul.f32 %v663, %v663
        %v667 = vmul.f32 %v664, %v664
        %v668 = vadd.f32 %v666, %v667
        %v669 = vmul.f32 %v665, %v665
        %v670 = vadd.f32 %v668, %v669
        %v671 = vmul.f32 %v670, -12.5
        %v672 = vmul.f32 %v671, 1.442695
        %v673 = vpow.pop %v672
        %v674 = vmul.f32 %v673, %v661
        %v675 = vadd.f32 %v596, %v674
        %v676 = vsub.f32 %v643, %v406
        %v677 = vsub.f32 %v648, %v411
        %v678 = vsub.f32 %v653, %v416
        %v679 = vmul.f32 %v676, %v676
        %v680 = vmul.f32 %v677, %v677
        %v681 = vadd.f32 %v679, %v680
        %v682 = vmul.f32 %v678, %v678
        %v683 = vadd.f32 %v681, %v682
        %v684 = vmul.f32 %v683, -12.5
        %v685 = vmul.f32 %v684, 1.442695
        %v686 = vpow.pop %v685
        %v687 = vmul.f32 %v686, %v661
        %v688 = vadd.f32 %v609, %v687
        %v689 = vsub.f32 %v643, %v431
        %v690 = vsub.f32 %v648, %v436
        %v691 = vsub.f32 %v653, %v441
        %v692 = vmul.f32 %v689, %v689
        %v693 = vmul.f32 %v690, %v690
        %v694 = vadd.f32 %v692, %v693
        %v695 = vmul.f32 %v691, %v691
        %v696 = vadd.f32 %v694, %v695
        %v697 = vmul.f32 %v696, -12.5
        %v698 = vmul.f32 %v697, 1.442695
        %v699 = vpow.pop %v698
        %v700 = vmul.f32 %v699, %v661
        %v701 = vadd.f32 %v622, %v700
        %v702 = vsub.f32 %v643, %v456
        %v703 = vsub.f32 %v648, %v461
        %v704 = vsub.f32 %v653, %v466
        %v705 = vmul.f32 %v702, %v702
        %v706 = vmul.f32 %v703, %v703
        %v707 = vadd.f32 %v705, %v706
        %v708 = vmul.f32 %v704, %v704
        %v709 = vadd.f32 %v707, %v708
        %v710 = vmul.f32 %v709, -12.5
        %v711 = vmul.f32 %v710, 1.442695
        %v712 = vpow.pop %v711
        %v713 = vmul.f32 %v712, %v661
        %v714 = vadd.f32 %v635, %v713
        %s715 = scalar_lea.vmem %s317, 32
        %v716 = vld [vmem:[%s715] sm:$0xff]
        %718 = vset.pattern.permute.xlu0 0
        %719 = vperm.xlu0 %718, %v716
        %v720 = vpop.permute.xlu0 %719
        %v722 = vsub.f32 %v720, %v349
        %723 = vset.pattern.permute.xlu0 1
        %724 = vperm.xlu0 %723, %v716
        %v725 = vpop.permute.xlu0 %724
        %v727 = vsub.f32 %v725, %v358
        %728 = vset.pattern.permute.xlu0 2
        %729 = vperm.xlu0 %728, %v716
        %v730 = vpop.permute.xlu0 %729
        %v732 = vsub.f32 %v730, %v367
        %v733 = vmul.f32 %v722, %v722
        %v734 = vmul.f32 %v727, %v727
        %v735 = vadd.f32 %v733, %v734
        %v736 = vmul.f32 %v732, %v732
        %v737 = vadd.f32 %v735, %v736
        %vm738 = vcmp.lt.f32.partialorder %v737, 0.25
        %v739 = vsel %vm738, 1, 0
        %v740 = vcvt.s32.f32 %v739
        %v741 = vadd.f32 %v662, %v740
        %v742 = vsub.f32 %v722, %v381
        %v743 = vsub.f32 %v727, %v386
        %v744 = vsub.f32 %v732, %v391
        %v745 = vmul.f32 %v742, %v742
        %v746 = vmul.f32 %v743, %v743
        %v747 = vadd.f32 %v745, %v746
        %v748 = vmul.f32 %v744, %v744
        %v749 = vadd.f32 %v747, %v748
        %v750 = vmul.f32 %v749, -12.5
        %v751 = vmul.f32 %v750, 1.442695
        %v752 = vpow.pop %v751
        %v753 = vmul.f32 %v752, %v740
        %v754 = vadd.f32 %v675, %v753
        %v755 = vsub.f32 %v722, %v406
        %v756 = vsub.f32 %v727, %v411
        %v757 = vsub.f32 %v732, %v416
        %v758 = vmul.f32 %v755, %v755
        %v759 = vmul.f32 %v756, %v756
        %v760 = vadd.f32 %v758, %v759
        %v761 = vmul.f32 %v757, %v757
        %v762 = vadd.f32 %v760, %v761
        %v763 = vmul.f32 %v762, -12.5
        %v764 = vmul.f32 %v763, 1.442695
        %v765 = vpow.pop %v764
        %v766 = vmul.f32 %v765, %v740
        %v767 = vadd.f32 %v688, %v766
        %v768 = vsub.f32 %v722, %v431
        %v769 = vsub.f32 %v727, %v436
        %v770 = vsub.f32 %v732, %v441
        %v771 = vmul.f32 %v768, %v768
        %v772 = vmul.f32 %v769, %v769
        %v773 = vadd.f32 %v771, %v772
        %v774 = vmul.f32 %v770, %v770
        %v775 = vadd.f32 %v773, %v774
        %v776 = vmul.f32 %v775, -12.5
        %v777 = vmul.f32 %v776, 1.442695
        %v778 = vpow.pop %v777
        %v779 = vmul.f32 %v778, %v740
        %v780 = vadd.f32 %v701, %v779
        %v781 = vsub.f32 %v722, %v456
        %v782 = vsub.f32 %v727, %v461
        %v783 = vsub.f32 %v732, %v466
        %v784 = vmul.f32 %v781, %v781
        %v785 = vmul.f32 %v782, %v782
        %v786 = vadd.f32 %v784, %v785
        %v787 = vmul.f32 %v783, %v783
        %v788 = vadd.f32 %v786, %v787
        %v789 = vmul.f32 %v788, -12.5
        %v790 = vmul.f32 %v789, 1.442695
        %v791 = vpow.pop %v790
        %v792 = vmul.f32 %v791, %v740
        %v793 = vadd.f32 %v714, %v792
        %s794 = scalar_lea.vmem %s317, 40
        %v795 = vld [vmem:[%s794] sm:$0xff]
        %797 = vset.pattern.permute.xlu0 0
        %798 = vperm.xlu0 %797, %v795
        %v799 = vpop.permute.xlu0 %798
        %v801 = vsub.f32 %v799, %v349
        %802 = vset.pattern.permute.xlu0 1
        %803 = vperm.xlu0 %802, %v795
        %v804 = vpop.permute.xlu0 %803
        %v806 = vsub.f32 %v804, %v358
        %807 = vset.pattern.permute.xlu0 2
        %808 = vperm.xlu0 %807, %v795
        %v809 = vpop.permute.xlu0 %808
        %v811 = vsub.f32 %v809, %v367
        %v812 = vmul.f32 %v801, %v801
        %v813 = vmul.f32 %v806, %v806
        %v814 = vadd.f32 %v812, %v813
        %v815 = vmul.f32 %v811, %v811
        %v816 = vadd.f32 %v814, %v815
        %vm817 = vcmp.lt.f32.partialorder %v816, 0.25
        %v818 = vsel %vm817, 1, 0
        %v819 = vcvt.s32.f32 %v818
        %v820 = vadd.f32 %v741, %v819
        %v821 = vsub.f32 %v801, %v381
        %v822 = vsub.f32 %v806, %v386
        %v823 = vsub.f32 %v811, %v391
        %v824 = vmul.f32 %v821, %v821
        %v825 = vmul.f32 %v822, %v822
        %v826 = vadd.f32 %v824, %v825
        %v827 = vmul.f32 %v823, %v823
        %v828 = vadd.f32 %v826, %v827
        %v829 = vmul.f32 %v828, -12.5
        %v830 = vmul.f32 %v829, 1.442695
        %v831 = vpow.pop %v830
        %v832 = vmul.f32 %v831, %v819
        %v833 = vadd.f32 %v754, %v832
        %v834 = vsub.f32 %v801, %v406
        %v835 = vsub.f32 %v806, %v411
        %v836 = vsub.f32 %v811, %v416
        %v837 = vmul.f32 %v834, %v834
        %v838 = vmul.f32 %v835, %v835
        %v839 = vadd.f32 %v837, %v838
        %v840 = vmul.f32 %v836, %v836
        %v841 = vadd.f32 %v839, %v840
        %v842 = vmul.f32 %v841, -12.5
        %v843 = vmul.f32 %v842, 1.442695
        %v844 = vpow.pop %v843
        %v845 = vmul.f32 %v844, %v819
        %v846 = vadd.f32 %v767, %v845
        %v847 = vsub.f32 %v801, %v431
        %v848 = vsub.f32 %v806, %v436
        %v849 = vsub.f32 %v811, %v441
        %v850 = vmul.f32 %v847, %v847
        %v851 = vmul.f32 %v848, %v848
        %v852 = vadd.f32 %v850, %v851
        %v853 = vmul.f32 %v849, %v849
        %v854 = vadd.f32 %v852, %v853
        %v855 = vmul.f32 %v854, -12.5
        %v856 = vmul.f32 %v855, 1.442695
        %v857 = vpow.pop %v856
        %v858 = vmul.f32 %v857, %v819
        %v859 = vadd.f32 %v780, %v858
        %v860 = vsub.f32 %v801, %v456
        %v861 = vsub.f32 %v806, %v461
        %v862 = vsub.f32 %v811, %v466
        %v863 = vmul.f32 %v860, %v860
        %v864 = vmul.f32 %v861, %v861
        %v865 = vadd.f32 %v863, %v864
        %v866 = vmul.f32 %v862, %v862
        %v867 = vadd.f32 %v865, %v866
        %v868 = vmul.f32 %v867, -12.5
        %v869 = vmul.f32 %v868, 1.442695
        %v870 = vpow.pop %v869
        %v871 = vmul.f32 %v870, %v819
        %v872 = vadd.f32 %v793, %v871
        %s873 = scalar_lea.vmem %s317, 48
        %v874 = vld [vmem:[%s873] sm:$0xff]
        %876 = vset.pattern.permute.xlu0 0
        %877 = vperm.xlu0 %876, %v874
        %v878 = vpop.permute.xlu0 %877
        %v880 = vsub.f32 %v878, %v349
        %881 = vset.pattern.permute.xlu0 1
        %882 = vperm.xlu0 %881, %v874
        %v883 = vpop.permute.xlu0 %882
        %v885 = vsub.f32 %v883, %v358
        %886 = vset.pattern.permute.xlu0 2
        %887 = vperm.xlu0 %886, %v874
        %v888 = vpop.permute.xlu0 %887
        %v890 = vsub.f32 %v888, %v367
        %v891 = vmul.f32 %v880, %v880
        %v892 = vmul.f32 %v885, %v885
        %v893 = vadd.f32 %v891, %v892
        %v894 = vmul.f32 %v890, %v890
        %v895 = vadd.f32 %v893, %v894
        %vm896 = vcmp.lt.f32.partialorder %v895, 0.25
        %v897 = vsel %vm896, 1, 0
        %v898 = vcvt.s32.f32 %v897
        %v899 = vadd.f32 %v820, %v898
        %v900 = vsub.f32 %v880, %v381
        %v901 = vsub.f32 %v885, %v386
        %v902 = vsub.f32 %v890, %v391
        %v903 = vmul.f32 %v900, %v900
        %v904 = vmul.f32 %v901, %v901
        %v905 = vadd.f32 %v903, %v904
        %v906 = vmul.f32 %v902, %v902
        %v907 = vadd.f32 %v905, %v906
        %v908 = vmul.f32 %v907, -12.5
        %v909 = vmul.f32 %v908, 1.442695
        %v910 = vpow.pop %v909
        %v911 = vmul.f32 %v910, %v898
        %v912 = vadd.f32 %v833, %v911
        %v913 = vsub.f32 %v880, %v406
        %v914 = vsub.f32 %v885, %v411
        %v915 = vsub.f32 %v890, %v416
        %v916 = vmul.f32 %v913, %v913
        %v917 = vmul.f32 %v914, %v914
        %v918 = vadd.f32 %v916, %v917
        %v919 = vmul.f32 %v915, %v915
        %v920 = vadd.f32 %v918, %v919
        %v921 = vmul.f32 %v920, -12.5
        %v922 = vmul.f32 %v921, 1.442695
        %v923 = vpow.pop %v922
        %v924 = vmul.f32 %v923, %v898
        %v925 = vadd.f32 %v846, %v924
        %v926 = vsub.f32 %v880, %v431
        %v927 = vsub.f32 %v885, %v436
        %v928 = vsub.f32 %v890, %v441
        %v929 = vmul.f32 %v926, %v926
        %v930 = vmul.f32 %v927, %v927
        %v931 = vadd.f32 %v929, %v930
        %v932 = vmul.f32 %v928, %v928
        %v933 = vadd.f32 %v931, %v932
        %v934 = vmul.f32 %v933, -12.5
        %v935 = vmul.f32 %v934, 1.442695
        %v936 = vpow.pop %v935
        %v937 = vmul.f32 %v936, %v898
        %v938 = vadd.f32 %v859, %v937
        %v939 = vsub.f32 %v880, %v456
        %v940 = vsub.f32 %v885, %v461
        %v941 = vsub.f32 %v890, %v466
        %v942 = vmul.f32 %v939, %v939
        %v943 = vmul.f32 %v940, %v940
        %v944 = vadd.f32 %v942, %v943
        %v945 = vmul.f32 %v941, %v941
        %v946 = vadd.f32 %v944, %v945
        %v947 = vmul.f32 %v946, -12.5
        %v948 = vmul.f32 %v947, 1.442695
        %v949 = vpow.pop %v948
        %v950 = vmul.f32 %v949, %v898
        %v951 = vadd.f32 %v872, %v950
        %s952 = scalar_lea.vmem %s317, 56
        %v953 = vld [vmem:[%s952] sm:$0xff]
        %955 = vset.pattern.permute.xlu0 0
        %956 = vperm.xlu0 %955, %v953
        %v957 = vpop.permute.xlu0 %956
        %v959 = vsub.f32 %v957, %v349
        %960 = vset.pattern.permute.xlu0 1
        %961 = vperm.xlu0 %960, %v953
        %v962 = vpop.permute.xlu0 %961
        %v964 = vsub.f32 %v962, %v358
        %965 = vset.pattern.permute.xlu0 2
        %966 = vperm.xlu0 %965, %v953
        %v967 = vpop.permute.xlu0 %966
        %v969 = vsub.f32 %v967, %v367
        %v970 = vmul.f32 %v959, %v959
        %v971 = vmul.f32 %v964, %v964
        %v972 = vadd.f32 %v970, %v971
        %v973 = vmul.f32 %v969, %v969
        %v974 = vadd.f32 %v972, %v973
        %vm975 = vcmp.lt.f32.partialorder %v974, 0.25
        %v976 = vsel %vm975, 1, 0
        %v977 = vcvt.s32.f32 %v976
        %v978 = vadd.f32 %v899, %v977
        %v979 = vsub.f32 %v959, %v381
        %v980 = vsub.f32 %v964, %v386
        %v981 = vsub.f32 %v969, %v391
        %v982 = vmul.f32 %v979, %v979
        %v983 = vmul.f32 %v980, %v980
        %v984 = vadd.f32 %v982, %v983
        %v985 = vmul.f32 %v981, %v981
        %v986 = vadd.f32 %v984, %v985
        %v987 = vmul.f32 %v986, -12.5
        %v988 = vmul.f32 %v987, 1.442695
        %v989 = vpow.pop %v988
        %v990 = vmul.f32 %v989, %v977
        %v991 = vadd.f32 %v912, %v990
        %v992 = vsub.f32 %v959, %v406
        %v993 = vsub.f32 %v964, %v411
        %v994 = vsub.f32 %v969, %v416
        %v995 = vmul.f32 %v992, %v992
        %v996 = vmul.f32 %v993, %v993
        %v997 = vadd.f32 %v995, %v996
        %v998 = vmul.f32 %v994, %v994
        %v999 = vadd.f32 %v997, %v998
        %v1000 = vmul.f32 %v999, -12.5
        %v1001 = vmul.f32 %v1000, 1.442695
        %v1002 = vpow.pop %v1001
        %v1003 = vmul.f32 %v1002, %v977
        %v1004 = vadd.f32 %v925, %v1003
        %v1005 = vsub.f32 %v959, %v431
        %v1006 = vsub.f32 %v964, %v436
        %v1007 = vsub.f32 %v969, %v441
        %v1008 = vmul.f32 %v1005, %v1005
        %v1009 = vmul.f32 %v1006, %v1006
        %v1010 = vadd.f32 %v1008, %v1009
        %v1011 = vmul.f32 %v1007, %v1007
        %v1012 = vadd.f32 %v1010, %v1011
        %v1013 = vmul.f32 %v1012, -12.5
        %v1014 = vmul.f32 %v1013, 1.442695
        %v1015 = vpow.pop %v1014
        %v1016 = vmul.f32 %v1015, %v977
        %v1017 = vadd.f32 %v938, %v1016
        %v1018 = vsub.f32 %v959, %v456
        %v1019 = vsub.f32 %v964, %v461
        %v1020 = vsub.f32 %v969, %v466
        %v1021 = vmul.f32 %v1018, %v1018
        %v1022 = vmul.f32 %v1019, %v1019
        %v1023 = vadd.f32 %v1021, %v1022
        %v1024 = vmul.f32 %v1020, %v1020
        %v1025 = vadd.f32 %v1023, %v1024
        %v1026 = vmul.f32 %v1025, -12.5
        %v1027 = vmul.f32 %v1026, 1.442695
        %v1028 = vpow.pop %v1027
        %v1029 = vmul.f32 %v1028, %v977
        %v1030 = vadd.f32 %v951, %v1029
        %v1031 = vld [vmem:[#allocation3] sm:$0x1]
        %v1032 = vrot.slane %v978, 4
        %v1033 = vadd.f32 %v978, %v1032
        %v1034 = vrot.slane %v1033, 2
        %v1035 = vadd.f32 %v1033, %v1034
        %v1036 = vrot.slane %v1035, 1
        %v1037 = vadd.f32 %v1035, %v1036
        %v1038 = vadd.f32 %v1031, %v1037
        %1039 = vst [vmem:[#allocation3] sm:$0x1] %v1038
        %v1040 = vrot.slane %v991, 4
        %v1041 = vadd.f32 %v991, %v1040
        %v1042 = vrot.slane %v1041, 2
        %v1043 = vadd.f32 %v1041, %v1042
        %v1044 = vrot.slane %v1043, 1
        %v1045 = vadd.f32 %v1043, %v1044
        %v1046 = vrot.slane %v1004, 4
        %v1047 = vadd.f32 %v1004, %v1046
        %v1048 = vrot.slane %v1047, 2
        %v1049 = vadd.f32 %v1047, %v1048
        %v1050 = vrot.slane %v1049, 1
        %v1051 = vadd.f32 %v1049, %v1050
        %v1052 = vrot.slane %v1017, 4
        %v1053 = vadd.f32 %v1017, %v1052
        %v1054 = vrot.slane %v1053, 2
        %v1055 = vadd.f32 %v1053, %v1054
        %v1056 = vrot.slane %v1055, 1
        %v1057 = vadd.f32 %v1055, %v1056
        %v1058 = vrot.slane %v1030, 4
        %v1059 = vadd.f32 %v1030, %v1058
        %v1060 = vrot.slane %v1059, 2
        %v1061 = vadd.f32 %v1059, %v1060
        %v1062 = vrot.slane %v1061, 1
        %v1063 = vadd.f32 %v1061, %v1062
        %vm1064 = vcmask 1040384
        %v1065 = vsel %vm1064, %v1045, %v1051
        %vm1066 = vcmask 1041408
        %v1067 = vsel %vm1066, %v1065, %v1057
        %vm1068 = vcmask 1042432
        %v1069 = vsel %vm1068, %v1067, %v1063
        %v1070 = vld [vmem:[#allocation2] sm:$0xf]
        %v1071 = vadd.f32 %v1070, %v1069
        %1072 = vst [vmem:[#allocation2] sm:$0xf] %v1071
        // Predicated region
        $region45: #{tpu_custom_call.1} parent=39 // pred_check
          %p1073 = pneg %p330
        $region46: #{tpu_custom_call.1} parent=39 // pred_check_branch
          %1075 = sbr.rel (%p1073) target = $region48
        $region47: #{tpu_custom_call.1} parent=39 // pred_region
          %v1076 = vld [vmem:[#allocation3] sm:$0x1]
          %v1077 = vld [vmem:[#allocation2] sm:$0xf]
          %v1078 = vadd.f32 %v1076, 1.0
          %v1079 = vrcp.pop %v1078
          %v1080 = vmul.f32 1.0, %v1079
          %v1082 = vlaneseq
          %v1083 = vshrl.u32 %v1082, 7
          %v1084 = vsub.s32 0, %v1083
          %v1085 = vrot.slane %v1080, %v1084
          %v1087 = vmul.f32 %v1077, %v1085
          %v1088 = vld [vmem:[%s3] sm:$0xff]
          %1090 = vset.pattern.permute.xlu0 0
          %1091 = vperm.xlu0 %1090, %v1088
          %v1092 = vpop.permute.xlu0 %1091
          %v1094 = vlaneseq
          %v1095 = vshrl.u32 %v1094, 7
          %v1096 = vsub.s32 0, %v1095
          %v1097 = vrot.slane %v1087, %v1096
          %v1098 = vmul.f32 %v1092, %v1097
          %v1099 = vadd.f32 %v1098, 0.0
          %1100 = vset.pattern.permute.xlu0 1
          %1101 = vperm.xlu0 %1100, %v1088
          %v1102 = vpop.permute.xlu0 %1101
          %v1104 = vlaneseq
          %v1105 = vshrl.u32 %v1104, 7
          %v1106 = vsub.s32 1, %v1105
          %v1107 = vrot.slane %v1087, %v1106
          %v1108 = vmul.f32 %v1102, %v1107
          %v1109 = vadd.f32 %v1099, %v1108
          %1110 = vset.pattern.permute.xlu0 2
          %1111 = vperm.xlu0 %1110, %v1088
          %v1112 = vpop.permute.xlu0 %1111
          %v1114 = vlaneseq
          %v1115 = vshrl.u32 %v1114, 7
          %v1116 = vsub.s32 2, %v1115
          %v1117 = vrot.slane %v1087, %v1116
          %v1118 = vmul.f32 %v1112, %v1117
          %v1119 = vadd.f32 %v1109, %v1118
          %1120 = vset.pattern.permute.xlu0 3
          %1121 = vperm.xlu0 %1120, %v1088
          %v1122 = vpop.permute.xlu0 %1121
          %v1124 = vlaneseq
          %v1125 = vshrl.u32 %v1124, 7
          %v1126 = vsub.s32 3, %v1125
          %v1127 = vrot.slane %v1087, %v1126
          %v1128 = vmul.f32 %v1122, %v1127
          %v1129 = vadd.f32 %v1119, %v1128
          %v1130 = vld [vmem:[%s4] sm:$0xff]
          %1132 = vset.pattern.permute.xlu0 0
          %1133 = vperm.xlu0 %1132, %v1130
          %v1134 = vpop.permute.xlu0 %1133
          %v1136 = vadd.f32 %v1129, %v1134
          %1137 = vst [vmem:[%s306] sm:$0xff] %v1136
          %1138 = vst [vmem:[%s312] sm:$0x1] %v1076
        $region48: #{tpu_custom_call.1} parent=39 // pred_fallthru
          _
        %s1139 = sand.u32 %s175, 1
        %s1140 = scalar_lea.sflag [#allocation5], %s1139
        %s1141 = sand.u32 %s175, 1
        %s1142 = smul.addr %s1141, 8
        %s1143 = scalar_lea.vmem [#allocation4], %s1142
        %s1144 = sand.u32 %s203, 1
        %s1145 = scalar_lea.sflag [#allocation7], %s1144
        %s1146 = sand.u32 %s203, 1
        %s1147 = scalar_lea.vmem [#allocation6], %s1146
        // Predicated region
        $region49: #{tpu_custom_call.1} parent=39 // pred_check
          %p1148 = pneg %p185
        $region50: #{tpu_custom_call.1} parent=39 // pred_check_branch
          %1150 = sbr.rel (%p1148) target = $region52
        $region51: #{tpu_custom_call.1} parent=39 // pred_region
          %s1152 = ssub.s32 128, 128
          %1153 = vsyncadd %s1140, %s1152
          %s1154 = sadd.s32 %s30, %s29
          %s1155 = smul.addr %s1154, 128
          %s1156 = scalar_lea.hbm %s5, %s1155
          %s1158 = sshll.u32 %s1143, 4
          %s1159 = int_to_ptr.vmem [resolvable:$true] %s1158
          %1161 = dma.vmem_to_hbm [thread:$0]  %s1159, 128, %s1156, %s1140
        $region52: #{tpu_custom_call.1} parent=39 // pred_fallthru
          _
        // Predicated region
        $region53: #{tpu_custom_call.1} parent=39 // pred_check
          %p1162 = pneg %p213
        $region54: #{tpu_custom_call.1} parent=39 // pred_check_branch
          %1164 = sbr.rel (%p1162) target = $region56
        $region55: #{tpu_custom_call.1} parent=39 // pred_region
          %s1166 = ssub.s32 16, 16
          %1167 = vsyncadd %s1145, %s1166
          %s1168 = sadd.s32 %s30, %s29
          %s1169 = smul.addr %s1168, 16
          %s1170 = scalar_lea.hbm %s6, %s1169
          %s1172 = sshll.u32 %s1147, 4
          %s1173 = int_to_ptr.vmem [resolvable:$true] %s1172
          %1175 = dma.vmem_to_hbm [thread:$0]  %s1173, 16, %s1170, %s1145
        $region56: #{tpu_custom_call.1} parent=39 // pred_fallthru
          _
      $region40: #{tpu_custom_call.1} parent=5 // pred_fallthru
        _
      %p1176 = scmp.le.s32.totalorder 2, %s19
      // Predicated region
      $region57: #{tpu_custom_call.1} parent=5 // pred_check
        %p1177 = pneg %p1176
      $region58: #{tpu_custom_call.1} parent=5 // pred_check_branch
        %1179 = sbr.rel (%p1177) target = $region60
      $region59: #{tpu_custom_call.1} parent=5 // pred_region
        %s1180 = ssub.s32 %s19, 2
        // Predicated region
        $region61: #{tpu_custom_call.1} parent=59 // pred_check
          %p1181 = pneg %p191
        $region62: #{tpu_custom_call.1} parent=59 // pred_check_branch
          %1183 = sbr.rel (%p1181) target = $region64
        $region63: #{tpu_custom_call.1} parent=59 // pred_region
          %s1184 = sand.u32 %s176, 1
          %s1185 = scalar_lea.sflag [#allocation5], %s1184
          %s1186 = sand.u32 %s176, 1
          %s1187 = smul.addr %s1186, 8
          %s1188 = scalar_lea.vmem [#allocation4], %s1187
          %1189 = dma.done %s1185, 128
        $region64: #{tpu_custom_call.1} parent=59 // pred_fallthru
          _
        // Predicated region
        $region65: #{tpu_custom_call.1} parent=59 // pred_check
          %p1190 = pneg %p219
        $region66: #{tpu_custom_call.1} parent=59 // pred_check_branch
          %1192 = sbr.rel (%p1190) target = $region68
        $region67: #{tpu_custom_call.1} parent=59 // pred_region
          %s1193 = sand.u32 %s204, 1
          %s1194 = scalar_lea.sflag [#allocation7], %s1193
          %s1195 = sand.u32 %s204, 1
          %s1196 = scalar_lea.vmem [#allocation6], %s1195
          %1197 = dma.done %s1194, 16
        $region68: #{tpu_custom_call.1} parent=59 // pred_fallthru
          _
      $region60: #{tpu_custom_call.1} parent=5 // pred_fallthru
        _
    $region6: #{tpu_custom_call.1} parent=1 // loop_footer
      %s23 = sadd.s32 1, %s19
    $region7: #{tpu_custom_call.1} parent=1 // loop_footer_branch
      %18 = sbr.rel target = $region3
    $region8: #{tpu_custom_call.1} parent=1 // loop_exit
      _
    %1198 = vsyncpa [#allocation5], 1
    %s1199 = scalar_lea.sflag [#allocation5], 1
    %1200 = vsyncpa %s1199, 1
    %1201 = vsyncpa [#allocation7], 1
    %s1202 = scalar_lea.sflag [#allocation7], 1
    %1203 = vsyncpa %s1202, 1

</llo_original>
